<compile_context>
chip_gen: v6e
topology: v6e:2x2x1
jax: 0.10.0
libtpu: 0.0.40
codegen_flags: <defaults>
</compile_context>

<pallas_src>
import math
import functools

import jax
import jax.numpy as jnp
from jax import lax
from jax.experimental import pallas as pl
from jax.experimental.pallas import tpu as pltpu


def _attn_kernel(x_ref, wqkv_ref, wo_ref, o_ref, *, heads, attend_dim):
    C_in, S = x_ref.shape[1], x_ref.shape[2]
    qkv_dim = heads * attend_dim

    x = x_ref[0]           # (C_in, S)   features on sublanes, spatial on lanes
    w = wqkv_ref[...]      # (3*qkv_dim, C_in)  rows = [sqrt(ad)*Wq ; Wk ; Wv]
    wo = wo_ref[...]       # (C_in, qkv_dim)    head-major columns

    # One fused projection matmul for Q, K, V across all heads.
    qkv = jnp.dot(w, x, preferred_element_type=jnp.float32)     # (3*qkv_dim, S)

    # Ones row for the softmax-denominator matmul; hoisted out of the head loop
    # (JAX does not CSE broadcasts).
    ones_row = jnp.ones((1, S), jnp.float32)

    nt = (((1,), (1,)), ((), ()))   # contract last dims of both operands
    tn = (((0,), (0,)), ((), ()))   # contract first dims of both operands

    acc = jnp.zeros((C_in, S), jnp.float32)
    # Static unroll is fine for heads <= ~4; switch to lax.fori_loop(unroll=True) or a
    # grid axis if heads grows (bounds live ranges / vreg pressure).
    for h in range(heads):
        r = h * attend_dim
        q = qkv[r:r + attend_dim, :]                                       # (ad, S)
        k = qkv[qkv_dim + r:qkv_dim + r + attend_dim, :]                   # (ad, S)
        v = qkv[2 * qkv_dim + r:2 * qkv_dim + r + attend_dim, :]           # (ad, S)

        # scores s[i_q, j_k] = sum_c q[c,i]*k[c,j]  (sqrt(ad) already folded into Wq).
        s = lax.dot_general(q, k, tn, preferred_element_type=jnp.float32)  # (S_q, S_k)

        # Unnormalized, numerically-stable softmax over keys (last dim).
        m = jnp.max(s, axis=-1, keepdims=True)                             # (S_q, 1)
        e = jnp.exp(s - m)                                                 # (S_q, S_k)

        # Denominator per query, produced directly in (1, S_q) lane orientation.
        l = lax.dot_general(ones_row, e, nt,
                            preferred_element_type=jnp.float32)            # (1, S_q)

        # Fold this head's to_out columns into V before the PV matmul
        # (Wo_h @ (V_h @ P) == (Wo_h @ V_h) @ P): output rows drop from ad to C_in and
        # the per-head accumulate removes the head concatenate entirely.
        wv = jnp.dot(wo[:, r:r + attend_dim], v,
                     preferred_element_type=jnp.float32)                   # (C_in, S_k)

        # PV matmul - the only contraction with a healthy K (=S) - in bf16, f32 acc.
        pv = lax.dot_general(wv.astype(jnp.bfloat16), e.astype(jnp.bfloat16),
                             nt, preferred_element_type=jnp.float32)       # (C_in, S_q)

        # Normalize AFTER the PV matmul (C_in*S multiplies, not S*S); exact reciprocal
        # on a (1, S) vector is essentially free.
        acc = acc + pv * pl.reciprocal(l, approx=False)

    # Channel-first, spatial-last store: lane-dense (S is a multiple of 128).
    o_ref[0] = acc.astype(o_ref.dtype)


def self_attention_cnn(x_nchw, wq, wk, wv, wo, heads, attend_dim):
    """x_nchw: (B, C_in, H, W) f32.  wq/wk/wv: (qkv_dim, C_in), wo: (C_in, qkv_dim)."""
    B, C_in, H, W = x_nchw.shape
    S = H * W
    qkv_dim = heads * attend_dim
    # NOTE: the PyTorch module MULTIPLIES the logits by sqrt(attend_dim) (non-standard);
    # it is folded into the Q rows here - do not "fix" this to a divide.
    scale = math.sqrt(attend_dim)

    # NCHW -> (B, C_in, S): a free reshape (no transpose, no extra HBM pass).
    x_cs = x_nchw.reshape(B, C_in, S)

    # Stacked projection weight rows: [scale*Wq ; Wk ; Wv] -> (3*qkv_dim, C_in).
    wqkv = jnp.concatenate([wq * scale, wk, wv], axis=0)

    kernel = functools.partial(_attn_kernel, heads=heads, attend_dim=attend_dim)

    out_cs = pl.pallas_call(
        kernel,
        out_shape=jax.ShapeDtypeStruct((B, C_in, S), jnp.float32),
        grid_spec=pltpu.PrefetchScalarGridSpec(
            num_scalar_prefetch=0,
            grid=(B,),                                              # serial on v5e/v6e;
            in_specs=[                                              # 2 TCs share it on v7x
                pl.BlockSpec((1, C_in, S), lambda b: (b, 0, 0)),    # x: lane-dense DMA
                pl.BlockSpec((3 * qkv_dim, C_in), lambda b: (0, 0)),  # fused Wqkv (resident)
                pl.BlockSpec((C_in, qkv_dim), lambda b: (0, 0)),      # Wo (resident)
            ],
            out_specs=pl.BlockSpec((1, C_in, S), lambda b: (b, 0, 0)),  # channel-first
        ),
        compiler_params=pltpu.CompilerParams(
            dimension_semantics=("parallel",)),
    )(x_cs, wqkv, wo)

    # (B, C_in, S) is already channel-first; just reshape spatial back to (H, W).
    return out_cs.reshape(B, C_in, H, W)


def _reference(x_nchw, wq, wk, wv, wo, heads, attend_dim):
    B, C_in, H, W = x_nchw.shape
    S = H * W
    x_seq = jnp.transpose(x_nchw, (0, 2, 3, 1)).reshape(B, S, C_in)          # (B,S,C)
    q = jnp.einsum("bsc,oc->bso", x_seq, wq).reshape(B, S, heads, attend_dim).transpose(0, 2, 1, 3)
    k = jnp.einsum("bsc,oc->bso", x_seq, wk).reshape(B, S, heads, attend_dim).transpose(0, 2, 1, 3)
    v = jnp.einsum("bsc,oc->bso", x_seq, wv).reshape(B, S, heads, attend_dim).transpose(0, 2, 1, 3)
    attn = jnp.einsum("bhqc,bhkc->bhqk", q, k) * math.sqrt(attend_dim)
    attn = jax.nn.softmax(attn, axis=-1)
    out = jnp.einsum("bhqk,bhkc->bhqc", attn, v)                              # (B,heads,S,ad)
    out = out.transpose(0, 2, 1, 3).reshape(B, S, heads * attend_dim)
    out = jnp.einsum("bso,co->bsc", out, wo)                                  # (B,S,C_in)
    return jnp.transpose(out.reshape(B, H, W, C_in), (0, 3, 1, 2))


if __name__ == "__main__":
    key = jax.random.PRNGKey(0)
    B, C_in, H, W = 2, 4, 16, 16       # S = H*W = 256 (multiple of 128 -> lane-dense)
    heads, attend_dim = 2, 16
    qkv_dim = heads * attend_dim

    k0, k1, k2, k3, k4 = jax.random.split(key, 5)
    x = jax.random.normal(k0, (B, C_in, H, W), dtype=jnp.float32)

    # Deterministic variance-scaling-style init (fan_in) for the 1x1 conv weights.
    def vs_init(k, out_dim, in_dim):
        std = 1.0 / math.sqrt(in_dim)
        return std * jax.random.normal(k, (out_dim, in_dim), dtype=jnp.float32)

    wq = vs_init(k1, qkv_dim, C_in)
    wk = vs_init(k2, qkv_dim, C_in)
    wv = vs_init(k3, qkv_dim, C_in)
    wo = vs_init(k4, C_in, qkv_dim)

    out = self_attention_cnn(x, wq, wk, wv, wo, heads, attend_dim)
    out = jax.block_until_ready(out)

    ref = _reference(x, wq, wk, wv, wo, heads, attend_dim)
    assert out.shape == (B, C_in, H, W)
    # Tolerance accommodates the deliberate bf16 PV matmul (probabilities/values cast to
    # bf16, f32 accumulation); the softmax reciprocal itself is exact.
    assert jnp.allclose(out, ref, atol=2e-2, rtol=2e-2), float(jnp.max(jnp.abs(out - ref)))
    print("KERNEL_OK")
</pallas_src>

<mosaic_0001>
module attributes {stable_mosaic.version = 11 : i64} {
  func.func @_attn_kernel(%arg0: i32, %arg1: memref<1x4x256xf32, #tpu.memory_space<vmem>>, %arg2: memref<96x4xf32, #tpu.memory_space<vmem>>, %arg3: memref<4x32xf32, #tpu.memory_space<vmem>>, %arg4: memref<1x4x256xf32, #tpu.memory_space<vmem>>) attributes {dimension_semantics = [#tpu.dimension_semantics<parallel>], iteration_bounds = array<i64: 2>, scalar_prefetch = 0 : i64, scratch_operands = 0 : i64, tpu.core_type = #tpu.core_type<tc>, window_params = [{transform_indices = @transform_0, window_bounds = array<i64: 1, 4, 256>}, {pipeline_mode = #tpu.pipeline_mode<synchronous>, transform_indices = @transform_1, window_bounds = array<i64: 96, 4>}, {pipeline_mode = #tpu.pipeline_mode<synchronous>, transform_indices = @transform_2, window_bounds = array<i64: 4, 32>}, {transform_indices = @transform_3, window_bounds = array<i64: 1, 4, 256>}]} {
    %c0 = arith.constant 0 : index
    %c0_0 = arith.constant 0 : index
    %c0_1 = arith.constant 0 : index
    %0 = vector.load %arg1[%c0, %c0_0, %c0_1] : memref<1x4x256xf32, #tpu.memory_space<vmem>>, vector<1x4x256xf32>
    %1 = vector.shape_cast %0 : vector<1x4x256xf32> to vector<4x256xf32>
    %c0_2 = arith.constant 0 : index
    %c0_3 = arith.constant 0 : index
    %2 = vector.load %arg2[%c0_2, %c0_3] : memref<96x4xf32, #tpu.memory_space<vmem>>, vector<96x4xf32>
    %c0_4 = arith.constant 0 : index
    %c0_5 = arith.constant 0 : index
    %3 = vector.load %arg3[%c0_4, %c0_5] : memref<4x32xf32, #tpu.memory_space<vmem>>, vector<4x32xf32>
    %cst = arith.constant dense<0.000000e+00> : vector<96x256xf32>
    %4 = tpu.matmul %2, %1, %cst {dimension_numbers = #tpu.dot_dimension_numbers<[1], [0], [0], [1], [0, 0, 1, 1], [], []>} : vector<96x4xf32>, vector<4x256xf32>, vector<96x256xf32> -> vector<96x256xf32>
    %cst_6 = arith.constant 1.000000e+00 : f32
    %5 = vector.broadcast %cst_6 : f32 to vector<1x256xf32>
    %cst_7 = arith.constant 0.000000e+00 : f32
    %6 = vector.broadcast %cst_7 : f32 to vector<4x256xf32>
    %7 = vector.extract_strided_slice %4 {offsets = [0, 0], sizes = [16, 256], strides = [1, 1]} : vector<96x256xf32> to vector<16x256xf32>
    %8 = vector.extract_strided_slice %4 {offsets = [32, 0], sizes = [16, 256], strides = [1, 1]} : vector<96x256xf32> to vector<16x256xf32>
    %9 = vector.extract_strided_slice %4 {offsets = [64, 0], sizes = [16, 256], strides = [1, 1]} : vector<96x256xf32> to vector<16x256xf32>
    %cst_8 = arith.constant dense<0.000000e+00> : vector<256x256xf32>
    %10 = tpu.matmul %7, %8, %cst_8 {dimension_numbers = #tpu.dot_dimension_numbers<[0], [0], [1], [1], [0, 1, 1, 1], [], []>} : vector<16x256xf32>, vector<16x256xf32>, vector<256x256xf32> -> vector<256x256xf32>
    %cst_9 = arith.constant dense<0xFF800000> : vector<256xf32>
    %11 = vector.multi_reduction <maximumf>, %10, %cst_9 [1] : vector<256x256xf32> to vector<256xf32>
    %12 = vector.shape_cast %11 : vector<256xf32> to vector<256x1xf32>
    %13 = vector.broadcast %12 : vector<256x1xf32> to vector<256x256xf32>
    %14 = arith.subf %10, %13 : vector<256x256xf32>
    %15 = math.exp %14 : vector<256x256xf32>
    %cst_10 = arith.constant dense<0.000000e+00> : vector<1x256xf32>
    %16 = tpu.matmul %5, %15, %cst_10 {dimension_numbers = #tpu.dot_dimension_numbers<[1], [1], [0], [0], [0, 0, 1, 0], [], []>} : vector<1x256xf32>, vector<256x256xf32>, vector<1x256xf32> -> vector<1x256xf32>
    %17 = vector.extract_strided_slice %3 {offsets = [0, 0], sizes = [4, 16], strides = [1, 1]} : vector<4x32xf32> to vector<4x16xf32>
    %cst_11 = arith.constant dense<0.000000e+00> : vector<4x256xf32>
    %18 = tpu.matmul %17, %9, %cst_11 {dimension_numbers = #tpu.dot_dimension_numbers<[1], [0], [0], [1], [0, 0, 1, 1], [], []>} : vector<4x16xf32>, vector<16x256xf32>, vector<4x256xf32> -> vector<4x256xf32>
    %19 = arith.truncf %18 : vector<4x256xf32> to vector<4x256xbf16>
    %20 = arith.truncf %15 : vector<256x256xf32> to vector<256x256xbf16>
    %cst_12 = arith.constant dense<0.000000e+00> : vector<4x256xf32>
    %21 = tpu.matmul %19, %20, %cst_12 {dimension_numbers = #tpu.dot_dimension_numbers<[1], [1], [0], [0], [0, 0, 1, 0], [], []>} : vector<4x256xbf16>, vector<256x256xbf16>, vector<4x256xf32> -> vector<4x256xf32>
    %22 = tpu.reciprocal %16 : vector<1x256xf32> -> vector<1x256xf32>
    %23 = vector.broadcast %22 : vector<1x256xf32> to vector<4x256xf32>
    %24 = arith.mulf %21, %23 : vector<4x256xf32>
    %25 = arith.addf %6, %24 : vector<4x256xf32>
    %26 = vector.extract_strided_slice %4 {offsets = [16, 0], sizes = [16, 256], strides = [1, 1]} : vector<96x256xf32> to vector<16x256xf32>
    %27 = vector.extract_strided_slice %4 {offsets = [48, 0], sizes = [16, 256], strides = [1, 1]} : vector<96x256xf32> to vector<16x256xf32>
    %28 = vector.extract_strided_slice %4 {offsets = [80, 0], sizes = [16, 256], strides = [1, 1]} : vector<96x256xf32> to vector<16x256xf32>
    %cst_13 = arith.constant dense<0.000000e+00> : vector<256x256xf32>
    %29 = tpu.matmul %26, %27, %cst_13 {dimension_numbers = #tpu.dot_dimension_numbers<[0], [0], [1], [1], [0, 1, 1, 1], [], []>} : vector<16x256xf32>, vector<16x256xf32>, vector<256x256xf32> -> vector<256x256xf32>
    %cst_14 = arith.constant dense<0xFF800000> : vector<256xf32>
    %30 = vector.multi_reduction <maximumf>, %29, %cst_14 [1] : vector<256x256xf32> to vector<256xf32>
    %31 = vector.shape_cast %30 : vector<256xf32> to vector<256x1xf32>
    %32 = vector.broadcast %31 : vector<256x1xf32> to vector<256x256xf32>
    %33 = arith.subf %29, %32 : vector<256x256xf32>
    %34 = math.exp %33 : vector<256x256xf32>
    %cst_15 = arith.constant dense<0.000000e+00> : vector<1x256xf32>
    %35 = tpu.matmul %5, %34, %cst_15 {dimension_numbers = #tpu.dot_dimension_numbers<[1], [1], [0], [0], [0, 0, 1, 0], [], []>} : vector<1x256xf32>, vector<256x256xf32>, vector<1x256xf32> -> vector<1x256xf32>
    %36 = vector.extract_strided_slice %3 {offsets = [0, 16], sizes = [4, 16], strides = [1, 1]} : vector<4x32xf32> to vector<4x16xf32>
    %cst_16 = arith.constant dense<0.000000e+00> : vector<4x256xf32>
    %37 = tpu.matmul %36, %28, %cst_16 {dimension_numbers = #tpu.dot_dimension_numbers<[1], [0], [0], [1], [0, 0, 1, 1], [], []>} : vector<4x16xf32>, vector<16x256xf32>, vector<4x256xf32> -> vector<4x256xf32>
    %38 = arith.truncf %37 : vector<4x256xf32> to vector<4x256xbf16>
    %39 = arith.truncf %34 : vector<256x256xf32> to vector<256x256xbf16>
    %cst_17 = arith.constant dense<0.000000e+00> : vector<4x256xf32>
    %40 = tpu.matmul %38, %39, %cst_17 {dimension_numbers = #tpu.dot_dimension_numbers<[1], [1], [0], [0], [0, 0, 1, 0], [], []>} : vector<4x256xbf16>, vector<256x256xbf16>, vector<4x256xf32> -> vector<4x256xf32>
    %41 = tpu.reciprocal %35 : vector<1x256xf32> -> vector<1x256xf32>
    %42 = vector.broadcast %41 : vector<1x256xf32> to vector<4x256xf32>
    %43 = arith.mulf %40, %42 : vector<4x256xf32>
    %44 = arith.addf %25, %43 : vector<4x256xf32>
    %c0_18 = arith.constant 0 : index
    %c0_19 = arith.constant 0 : index
    %c0_20 = arith.constant 0 : index
    %45 = vector.load %arg4[%c0_18, %c0_19, %c0_20] : memref<1x4x256xf32, #tpu.memory_space<vmem>>, vector<1x4x256xf32>
    %46 = vector.shape_cast %45 : vector<1x4x256xf32> to vector<4x256xf32>
    %47 = vector.shape_cast %44 : vector<4x256xf32> to vector<1x4x256xf32>
    tpu.vector_store %arg4[%c0_18, %c0_19, %c0_20], %47 {strides = array<i32>} : memref<1x4x256xf32, #tpu.memory_space<vmem>>, vector<1x4x256xf32>,
    return
  }
  func.func @transform_0(%arg0: i32) -> (i32, i32, i32) {
    %c0_i32 = arith.constant 0 : i32
    %c0_i32_0 = arith.constant 0 : i32
    %c0_i32_1 = arith.constant 0 : i32
    return %arg0, %c0_i32, %c0_i32_0 : i32, i32, i32
  }
  func.func @transform_1(%arg0: i32) -> (i32, i32) {
    %c0_i32 = arith.constant 0 : i32
    %c0_i32_0 = arith.constant 0 : i32
    %c0_i32_1 = arith.constant 0 : i32
    return %c0_i32, %c0_i32_0 : i32, i32
  }
  func.func @transform_2(%arg0: i32) -> (i32, i32) {
    %c0_i32 = arith.constant 0 : i32
    %c0_i32_0 = arith.constant 0 : i32
    %c0_i32_1 = arith.constant 0 : i32
    return %c0_i32, %c0_i32_0 : i32, i32
  }
  func.func @transform_3(%arg0: i32) -> (i32, i32, i32) {
    %c0_i32 = arith.constant 0 : i32
    %c0_i32_0 = arith.constant 0 : i32
    %c0_i32_1 = arith.constant 0 : i32
    return %arg0, %c0_i32, %c0_i32_0 : i32, i32, i32
  }
}

</mosaic_0001>

<llo_original>
// kernel: tpu_custom_call.1
$region0: #{tpu_custom_call.1}
  #allocation0 [shape = 'u32[]', space=smem, size = 0x4, offset = 0x4, fixed_abs, tag = 'smem constant byte address 0x4 - core index']
  #allocation1 [shape = 'u32[144,128]{1,0:T(1,128)}', space=vmem, size = 0x12000, scoped, tag = 'internal scratch']
  %s0 = inlined_call_operand.vmem [shape: f32[2,4,256], index: 0, kind: input, shape index: {}]
  %s1 = inlined_call_operand.vmem [shape: f32[96,4], index: 1, kind: input, shape index: {}]
  %s2 = inlined_call_operand.vmem [shape: f32[4,32], index: 2, kind: input, shape index: {}]
  %s3 = inlined_call_operand.hbm [shape: f32[2,4,256], index: 3, kind: output, shape index: {}]
  %s4 = sld [smem:[#allocation0]]
  $region45: #{tpu_custom_call.1} parent=0
    _
  %s6 = ssub.s32 1, %s4
  %s7 = scalar_select 0, %s6, %s4
  $region1: #{tpu_custom_call.1} parent=0
    #allocation2 [shape = 'u8[8192]{0}', space=vmem, size = 0x2000, scoped, tag = 'output window, operand 0']
    #allocation3 [shape = 's32[2]{0}', space=sflag, size = 0x8, scoped, tag = 'scoped memory for tpu_custom_call.1']
    %8 = vsyncpa [#allocation3], 0
    %s9 = scalar_lea.sflag [#allocation3], 1
    %10 = vsyncpa %s9, 0
    loop: start=0, step=1, limit=4
    $region2: #{tpu_custom_call.1} parent=1 // loop_pre_header
      _
    $region3: #{tpu_custom_call.1} parent=1 // loop_header
      %s12 = sphi 0, %s16
      %p13 = scmp.ge.s32.totalorder %s12, 4
      %s22 = sphi 0, %s24
      %s25 = sphi 0, %s22
      %s26 = sphi 0, %s25
      %s42 = sphi 0, %s26
      %s46 = sphi 0, %s46
      %s48 = sphi 0, %s46
      %s49 = sphi 0, %s48
      %s63 = sphi 0, %s49
      %s67 = sphi 0, %s67
      %s69 = sphi 0, %s67
      %s70 = sphi 0, %s69
      %s84 = sphi 0, %s70
      %s90 = sphi 0, %s92
      %s93 = sphi 0, %s90
      %s94 = sphi 0, %s93
      %s110 = sphi 0, %s94
    $region4: #{tpu_custom_call.1} parent=1 // loop_header_branch
      %15 = sbr.rel (%p13) target = $region8
    $region5: #{tpu_custom_call.1} parent=1 // loop_body
      %s17 = ssub.s32 %s12, 1
      %s18 = ssub.s32 %s12, 2
      %s19 = sadd.s32 %s12, 1
      %s20 = ssub.s32 %s12, %s19
      %p21 = scmp.eq.s32.totalorder %s20, 0
      %s23 = sadd.s32 %s22, 1
      %s24 = scalar_select %p21, %s22, %s23
      %p27 = pneg %p21
      %p28 = scmp.eq.s32.totalorder %s12, 1
      %p29 = por %p27, %p28
      %p30 = scmp.ne.s32.totalorder %s22, %s25
      %p31 = scmp.eq.s32.totalorder %s12, 0
      %p32 = por %p30, %p31
      %p33 = scmp.ne.s32.totalorder %s22, %s25
      %p34 = scmp.eq.s32.totalorder %s17, 1
      %p35 = por %p33, %p34
      %p36 = scmp.ne.s32.totalorder %s25, %s26
      %p37 = scmp.eq.s32.totalorder %s17, 0
      %p38 = por %p36, %p37
      %p39 = scmp.ne.s32.totalorder %s25, %s26
      %p40 = scmp.eq.s32.totalorder %s18, 1
      %p41 = por %p39, %p40
      %p43 = scmp.ne.s32.totalorder %s26, %s42
      %p44 = scmp.eq.s32.totalorder %s18, 0
      %p45 = por %p43, %p44
      %s47 = sadd.s32 %s46, 1
      %p50 = scmp.eq.s32.totalorder %s12, 1
      %p51 = scmp.ne.s32.totalorder %s46, %s48
      %p52 = scmp.eq.s32.totalorder %s12, 0
      %p53 = por %p51, %p52
      %p54 = scmp.ne.s32.totalorder %s46, %s48
      %p55 = scmp.eq.s32.totalorder %s17, 1
      %p56 = por %p54, %p55
      %p57 = scmp.ne.s32.totalorder %s48, %s49
      %p58 = scmp.eq.s32.totalorder %s17, 0
      %p59 = por %p57, %p58
      %p60 = scmp.ne.s32.totalorder %s48, %s49
      %p61 = scmp.eq.s32.totalorder %s18, 1
      %p62 = por %p60, %p61
      %p64 = scmp.ne.s32.totalorder %s49, %s63
      %p65 = scmp.eq.s32.totalorder %s18, 0
      %p66 = por %p64, %p65
      %s68 = sadd.s32 %s67, 1
      %p71 = scmp.eq.s32.totalorder %s12, 1
      %p72 = scmp.ne.s32.totalorder %s67, %s69
      %p73 = scmp.eq.s32.totalorder %s12, 0
      %p74 = por %p72, %p73
      %p75 = scmp.ne.s32.totalorder %s67, %s69
      %p76 = scmp.eq.s32.totalorder %s17, 1
      %p77 = por %p75, %p76
      %p78 = scmp.ne.s32.totalorder %s69, %s70
      %p79 = scmp.eq.s32.totalorder %s17, 0
      %p80 = por %p78, %p79
      %p81 = scmp.ne.s32.totalorder %s69, %s70
      %p82 = scmp.eq.s32.totalorder %s18, 1
      %p83 = por %p81, %p82
      %p85 = scmp.ne.s32.totalorder %s70, %s84
      %p86 = scmp.eq.s32.totalorder %s18, 0
      %p87 = por %p85, %p86
      %s88 = ssub.s32 %s12, %s19
      %p89 = scmp.eq.s32.totalorder %s88, 0
      %s91 = sadd.s32 %s90, 1
      %s92 = scalar_select %p89, %s90, %s91
      %p95 = pneg %p89
      %p96 = scmp.eq.s32.totalorder %s12, 1
      %p97 = por %p95, %p96
      %p98 = scmp.ne.s32.totalorder %s90, %s93
      %p99 = scmp.eq.s32.totalorder %s12, 0
      %p100 = por %p98, %p99
      %p101 = scmp.ne.s32.totalorder %s90, %s93
      %p102 = scmp.eq.s32.totalorder %s17, 1
      %p103 = por %p101, %p102
      %p104 = scmp.ne.s32.totalorder %s93, %s94
      %p105 = scmp.eq.s32.totalorder %s17, 0
      %p106 = por %p104, %p105
      %p107 = scmp.ne.s32.totalorder %s93, %s94
      %p108 = scmp.eq.s32.totalorder %s18, 1
      %p109 = por %p107, %p108
      %p111 = scmp.ne.s32.totalorder %s94, %s110
      %p112 = scmp.eq.s32.totalorder %s18, 0
      %p113 = por %p111, %p112
      %p114 = scmp.le.s32.totalorder 1, %s12
      %p115 = scmp.lt.s32.totalorder %s12, 3
      %p116 = pnand %p114, %p115
      %p117 = pneg %p116
      // Predicated region
      $region9: #{tpu_custom_call.1} parent=5 // pred_check
        _
      $region10: #{tpu_custom_call.1} parent=5 // pred_check_branch
        %119 = sbr.rel (%p116) target = $region12
      $region11: #{tpu_custom_call.1} parent=5 // pred_region
        %s120 = ssub.s32 %s12, 1
        // Predicated region
        $region13: #{tpu_custom_call.1} parent=11 // pred_check
          %p121 = pneg %p59
        $region14: #{tpu_custom_call.1} parent=11 // pred_check_branch
          %123 = sbr.rel (%p121) target = $region16
        $region15: #{tpu_custom_call.1} parent=11 // pred_region
          _
        $region16: #{tpu_custom_call.1} parent=11 // pred_fallthru
          _
        // Predicated region
        $region17: #{tpu_custom_call.1} parent=11 // pred_check
          %p124 = pneg %p80
        $region18: #{tpu_custom_call.1} parent=11 // pred_check_branch
          %126 = sbr.rel (%p124) target = $region20
        $region19: #{tpu_custom_call.1} parent=11 // pred_region
          _
        $region20: #{tpu_custom_call.1} parent=11 // pred_fallthru
          _
      $region12: #{tpu_custom_call.1} parent=5 // pred_fallthru
        _
      %p127 = scmp.lt.s32.totalorder %s12, 2
      // Predicated region
      $region21: #{tpu_custom_call.1} parent=5 // pred_check
        %p128 = pneg %p127
      $region22: #{tpu_custom_call.1} parent=5 // pred_check_branch
        %130 = sbr.rel (%p128) target = $region24
      $region23: #{tpu_custom_call.1} parent=5 // pred_region
        // Predicated region
        $region25: #{tpu_custom_call.1} parent=23 // pred_check
          %p131 = pneg %p32
        $region26: #{tpu_custom_call.1} parent=23 // pred_check_branch
          %133 = sbr.rel (%p131) target = $region28
        $region27: #{tpu_custom_call.1} parent=23 // pred_region
          %p134 = scmp.lt.s32.totalorder %s12, 1
          %s135 = scalar_select %p134, %s12, 1
          %s136 = smul.addr %s135, 2
          %s137 = smul.addr %s136, 4
          %s138 = scalar_lea.vmem %s0, %s137
        $region28: #{tpu_custom_call.1} parent=23 // pred_fallthru
          _
      $region24: #{tpu_custom_call.1} parent=5 // pred_fallthru
        _
      %p139 = scmp.le.s32.totalorder 1, %s12
      %p140 = scmp.lt.s32.totalorder %s12, 3
      %p141 = pnand %p139, %p140
      %p142 = pneg %p141
      // Predicated region
      $region29: #{tpu_custom_call.1} parent=5 // pred_check
        _
      $region30: #{tpu_custom_call.1} parent=5 // pred_check_branch
        %144 = sbr.rel (%p141) target = $region32
      $region31: #{tpu_custom_call.1} parent=5 // pred_region
        %s145 = ssub.s32 %s12, 1
        %p146 = scmp.lt.s32.totalorder %s17, 1
        %s147 = scalar_select %p146, %s17, 1
        %s148 = smul.addr %s147, 2
        %s149 = smul.addr %s148, 4
        %s150 = scalar_lea.vmem %s0, %s149
        %p151 = pneg %p38
        %p152 = pneg %p35
        %p153 = pneg %p59
        %p154 = pneg %p56
        %p155 = pneg %p80
        %p156 = pneg %p77
        %p157 = pneg %p106
        %p158 = pneg %p103
        %s159 = sand.u32 %s93, 1
        %s160 = scalar_lea.sflag [#allocation3], %s159
        %s161 = sand.u32 %s93, 1
        %s162 = smul.addr %s161, 8
        %s163 = scalar_lea.vmem [#allocation2], %s162
        %p164 = scmp.lt.s32.totalorder %s17, 1
        %s165 = scalar_select %p164, %s17, 1
        %s166 = smul.addr %s165, 2
        %s167 = smul.addr %s166, 4
        %s168 = scalar_lea.vmem %s0, %s167
        %v169 = vld [vmem:[%s168] sm:$0xff]
        %v170 = vld [vmem:[%s1] sm:$0xff]
        %v171 = vld [vmem:[%s1 + $0x8] sm:$0xff]
        %v172 = vld [vmem:[%s1 + $0x10] sm:$0xff]
        %v173 = vld [vmem:[%s1 + $0x18] sm:$0xff]
        %v174 = vld [vmem:[%s1 + $0x20] sm:$0xff]
        %v175 = vld [vmem:[%s1 + $0x28] sm:$0xff]
        %v176 = vld [vmem:[%s1 + $0x30] sm:$0xff]
        %v177 = vld [vmem:[%s1 + $0x38] sm:$0xff]
        %v178 = vld [vmem:[%s1 + $0x40] sm:$0xff]
        %v179 = vld [vmem:[%s1 + $0x48] sm:$0xff]
        %v180 = vld [vmem:[%s1 + $0x50] sm:$0xff]
        %v181 = vld [vmem:[%s1 + $0x58] sm:$0xff]
        %v182 = vld [vmem:[%s2] sm:$0xf]
        %v184 = vcombine.high %v169, %v169
        %vm185 = vcmask 31744
        %v187 = vsel %vm185, %v170, 0
        %v190 = vsel %vm185, %v171, 0
        %v193 = vsel %vm185, %v172, 0
        %v196 = vsel %vm185, %v173, 0
        %v199 = vsel %vm185, %v174, 0
        %v202 = vsel %vm185, %v175, 0
        %v205 = vsel %vm185, %v176, 0
        %v208 = vsel %vm185, %v177, 0
        %v211 = vsel %vm185, %v178, 0
        %v214 = vsel %vm185, %v179, 0
        %v217 = vsel %vm185, %v180, 0
        %v220 = vsel %vm185, %v181, 0
        %vm222 = vcmask 1043456
        %v223 = vsel %vm222, %v169, 0
        %v225 = vsel %vm222, %v184, 0
        %227 = vmatprep.subr.mxu0 0.0
        %228 = vmatpush1.msra.mxu0 0.0
        %229 = vmatprep.subr.mxu0 0.0
        %230 = vmatpush1.msra.mxu0 0.0
        %231 = vmatprep.subr.mxu0 0.0
        %232 = vmatpush1.msra.mxu0 0.0
        %233 = vmatprep.subr.mxu0 0.0
        %234 = vmatpush1.msra.mxu0 0.0
        %235 = vmatprep.subr.mxu0 0.0
        %236 = vmatpush1.msra.mxu0 0.0
        %237 = vmatprep.subr.mxu0 0.0
        %238 = vmatpush1.msra.mxu0 0.0
        %239 = vmatprep.subr.mxu0 0.0
        %240 = vmatpush1.msra.mxu0 0.0
        %241 = vmatprep.subr.mxu0 0.0
        %242 = vmatpush1.msra.mxu0 0.0
        %243 = vmatprep.subr.mxu0 0.0
        %244 = vmatpush1.msra.mxu0 0.0
        %245 = vmatprep.subr.mxu0 0.0
        %246 = vmatpush1.msra.mxu0 0.0
        %247 = vmatprep.subr.mxu0 0.0
        %248 = vmatpush1.msra.mxu0 0.0
        %249 = vmatprep.subr.mxu0 0.0
        %250 = vmatpush1.msra.mxu0 0.0
        %251 = vmatprep.subr.mxu0 0.0
        %252 = vmatpush1.msra.mxu0 0.0
        %253 = vmatprep.subr.mxu0 0.0
        %254 = vmatpush1.msra.mxu0 0.0
        %255 = vmatprep.subr.mxu0 0.0
        %256 = vmatpush1.msra.mxu0 0.0
        %257 = vmatprep.subr.mxu0 %v225
        %258 = vmatpush1.msra.mxu0 %v223
        %259 = vmatprep.subr.mxu0 0.0
        %260 = vmatpush2.msra.mxu0 0.0
        %261 = vmatprep.subr.mxu0 0.0
        %262 = vmatpush2.msra.mxu0 0.0
        %263 = vmatprep.subr.mxu0 0.0
        %264 = vmatpush2.msra.mxu0 0.0
        %265 = vmatprep.subr.mxu0 0.0
        %266 = vmatpush2.msra.mxu0 0.0
        %267 = vmatprep.subr.mxu0 0.0
        %268 = vmatpush2.msra.mxu0 0.0
        %269 = vmatprep.subr.mxu0 0.0
        %270 = vmatpush2.msra.mxu0 0.0
        %271 = vmatprep.subr.mxu0 0.0
        %272 = vmatpush2.msra.mxu0 0.0
        %273 = vmatprep.subr.mxu0 0.0
        %274 = vmatpush2.msra.mxu0 0.0
        %275 = vmatprep.subr.mxu0 0.0
        %276 = vmatpush2.msra.mxu0 0.0
        %277 = vmatprep.subr.mxu0 0.0
        %278 = vmatpush2.msra.mxu0 0.0
        %279 = vmatprep.subr.mxu0 0.0
        %280 = vmatpush2.msra.mxu0 0.0
        %281 = vmatprep.subr.mxu0 0.0
        %282 = vmatpush2.msra.mxu0 0.0
        %283 = vmatprep.subr.mxu0 0.0
        %284 = vmatpush2.msra.mxu0 0.0
        %285 = vmatprep.subr.mxu0 0.0
        %286 = vmatpush2.msra.mxu0 0.0
        %287 = vmatprep.subr.mxu0 0.0
        %288 = vmatpush2.msra.mxu0 0.0
        %289 = vmatprep.subr.mxu0 0.0
        %290 = vmatpush2.msra.mxu0 0.0
        %291 = vmatprep.mubr.f32.mxu0 0.0
        %292 = vmatmul.mubr.f32.gmra.mxu0 %v187
        %v293 = vpop.f32.mrf.mxu0
        %v294 = vadd.f32 0.0, %v293
        %v295 = vpop.f32.mrf.mxu0
        %v296 = vadd.f32 0.0, %v295
        %297 = vmatprep.mubr.f32.mxu0 0.0
        %298 = vmatmul.mubr.f32.gmra.mxu0 %v190
        %v299 = vpop.f32.mrf.mxu0
        %v300 = vadd.f32 0.0, %v299
        %v301 = vpop.f32.mrf.mxu0
        %v302 = vadd.f32 0.0, %v301
        %303 = vmatprep.mubr.f32.mxu0 0.0
        %304 = vmatmul.mubr.f32.gmra.mxu0 %v193
        %v305 = vpop.f32.mrf.mxu0
        %v306 = vadd.f32 0.0, %v305
        %v307 = vpop.f32.mrf.mxu0
        %v308 = vadd.f32 0.0, %v307
        %309 = vmatprep.mubr.f32.mxu0 0.0
        %310 = vmatmul.mubr.f32.gmra.mxu0 %v196
        %v311 = vpop.f32.mrf.mxu0
        %v312 = vadd.f32 0.0, %v311
        %v313 = vpop.f32.mrf.mxu0
        %v314 = vadd.f32 0.0, %v313
        %315 = vmatprep.mubr.f32.mxu0 0.0
        %316 = vmatmul.mubr.f32.gmra.mxu0 %v199
        %v317 = vpop.f32.mrf.mxu0
        %v318 = vadd.f32 0.0, %v317
        %v319 = vpop.f32.mrf.mxu0
        %v320 = vadd.f32 0.0, %v319
        %321 = vmatprep.mubr.f32.mxu0 0.0
        %322 = vmatmul.mubr.f32.gmra.mxu0 %v202
        %v323 = vpop.f32.mrf.mxu0
        %v324 = vadd.f32 0.0, %v323
        %v325 = vpop.f32.mrf.mxu0
        %v326 = vadd.f32 0.0, %v325
        %327 = vmatprep.mubr.f32.mxu0 0.0
        %328 = vmatmul.mubr.f32.gmra.mxu0 %v205
        %v329 = vpop.f32.mrf.mxu0
        %v330 = vadd.f32 0.0, %v329
        %v331 = vpop.f32.mrf.mxu0
        %v332 = vadd.f32 0.0, %v331
        %333 = vmatprep.mubr.f32.mxu0 0.0
        %334 = vmatmul.mubr.f32.gmra.mxu0 %v208
        %v335 = vpop.f32.mrf.mxu0
        %v336 = vadd.f32 0.0, %v335
        %v337 = vpop.f32.mrf.mxu0
        %v338 = vadd.f32 0.0, %v337
        %339 = vmatprep.mubr.f32.mxu0 0.0
        %340 = vmatmul.mubr.f32.gmra.mxu0 %v211
        %v341 = vpop.f32.mrf.mxu0
        %v342 = vadd.f32 0.0, %v341
        %v343 = vpop.f32.mrf.mxu0
        %v344 = vadd.f32 0.0, %v343
        %345 = vmatprep.mubr.f32.mxu0 0.0
        %346 = vmatmul.mubr.f32.gmra.mxu0 %v214
        %v347 = vpop.f32.mrf.mxu0
        %v348 = vadd.f32 0.0, %v347
        %v349 = vpop.f32.mrf.mxu0
        %v350 = vadd.f32 0.0, %v349
        %351 = vmatprep.mubr.f32.mxu0 0.0
        %352 = vmatmul.mubr.f32.gmra.mxu0 %v217
        %v353 = vpop.f32.mrf.mxu0
        %v354 = vadd.f32 0.0, %v353
        %v355 = vpop.f32.mrf.mxu0
        %v356 = vadd.f32 0.0, %v355
        %357 = vmatprep.mubr.f32.mxu0 0.0
        %358 = vmatmul.mubr.f32.gmra.mxu0 %v220
        %v359 = vpop.f32.mrf.mxu0
        %v360 = vadd.f32 0.0, %v359
        %v361 = vpop.f32.mrf.mxu0
        %v362 = vadd.f32 0.0, %v361
        %363 = vdwg.mxu0
        %364 = vxpose.xlu0.b32.start [1/16] %v294, 128
        %365 = vxpose.xlu0.b32.cont [2/16] %v300, 128
        %366 = vxpose.xlu0.b32.cont [3/16] 0.0, 128
        %367 = vxpose.xlu0.b32.cont [4/16] 0.0, 128
        %368 = vxpose.xlu0.b32.cont [5/16] 0.0, 128
        %369 = vxpose.xlu0.b32.cont [6/16] 0.0, 128
        %370 = vxpose.xlu0.b32.cont [7/16] 0.0, 128
        %371 = vxpose.xlu0.b32.cont [8/16] 0.0, 128
        %372 = vxpose.xlu0.b32.cont [9/16] 0.0, 128
        %373 = vxpose.xlu0.b32.cont [10/16] 0.0, 128
        %374 = vxpose.xlu0.b32.cont [11/16] 0.0, 128
        %375 = vxpose.xlu0.b32.cont [12/16] 0.0, 128
        %376 = vxpose.xlu0.b32.cont [13/16] 0.0, 128
        %377 = vxpose.xlu0.b32.cont [14/16] 0.0, 128
        %378 = vxpose.xlu0.b32.cont [15/16] 0.0, 128
        %379 = vxpose.xlu0.b32.end [16/16] 0.0, 128
        %v380 = vpop.trf.xlu0
        %v381 = vpop.trf.xlu0
        %v382 = vpop.trf.xlu0
        %v383 = vpop.trf.xlu0
        %v384 = vpop.trf.xlu0
        %v385 = vpop.trf.xlu0
        %v386 = vpop.trf.xlu0
        %v387 = vpop.trf.xlu0
        %v388 = vpop.trf.xlu0
        %v389 = vpop.trf.xlu0
        %v390 = vpop.trf.xlu0
        %v391 = vpop.trf.xlu0
        %v392 = vpop.trf.xlu0
        %v393 = vpop.trf.xlu0
        %v394 = vpop.trf.xlu0
        %v395 = vpop.trf.xlu0
        %396 = vxpose.xlu0.b32.start [1/16] %v296, 128
        %397 = vxpose.xlu0.b32.cont [2/16] %v302, 128
        %398 = vxpose.xlu0.b32.cont [3/16] 0.0, 128
        %399 = vxpose.xlu0.b32.cont [4/16] 0.0, 128
        %400 = vxpose.xlu0.b32.cont [5/16] 0.0, 128
        %401 = vxpose.xlu0.b32.cont [6/16] 0.0, 128
        %402 = vxpose.xlu0.b32.cont [7/16] 0.0, 128
        %403 = vxpose.xlu0.b32.cont [8/16] 0.0, 128
        %404 = vxpose.xlu0.b32.cont [9/16] 0.0, 128
        %405 = vxpose.xlu0.b32.cont [10/16] 0.0, 128
        %406 = vxpose.xlu0.b32.cont [11/16] 0.0, 128
        %407 = vxpose.xlu0.b32.cont [12/16] 0.0, 128
        %408 = vxpose.xlu0.b32.cont [13/16] 0.0, 128
        %409 = vxpose.xlu0.b32.cont [14/16] 0.0, 128
        %410 = vxpose.xlu0.b32.cont [15/16] 0.0, 128
        %411 = vxpose.xlu0.b32.end [16/16] 0.0, 128
        %v412 = vpop.trf.xlu0
        %v413 = vpop.trf.xlu0
        %v414 = vpop.trf.xlu0
        %v415 = vpop.trf.xlu0
        %v416 = vpop.trf.xlu0
        %v417 = vpop.trf.xlu0
        %v418 = vpop.trf.xlu0
        %v419 = vpop.trf.xlu0
        %v420 = vpop.trf.xlu0
        %v421 = vpop.trf.xlu0
        %v422 = vpop.trf.xlu0
        %v423 = vpop.trf.xlu0
        %v424 = vpop.trf.xlu0
        %v425 = vpop.trf.xlu0
        %v426 = vpop.trf.xlu0
        %v427 = vpop.trf.xlu0
        %vm428 = vcmask 130048
        %v430 = vsel %vm428, %v380, 0
        %v433 = vsel %vm428, %v381, 0
        %v436 = vsel %vm428, %v382, 0
        %v439 = vsel %vm428, %v383, 0
        %v442 = vsel %vm428, %v384, 0
        %v445 = vsel %vm428, %v385, 0
        %v448 = vsel %vm428, %v386, 0
        %v451 = vsel %vm428, %v387, 0
        %v454 = vsel %vm428, %v388, 0
        %v457 = vsel %vm428, %v389, 0
        %v460 = vsel %vm428, %v390, 0
        %v463 = vsel %vm428, %v391, 0
        %v466 = vsel %vm428, %v392, 0
        %v469 = vsel %vm428, %v393, 0
        %v472 = vsel %vm428, %v394, 0
        %v475 = vsel %vm428, %v395, 0
        %v478 = vsel %vm428, %v412, 0
        %v481 = vsel %vm428, %v413, 0
        %v484 = vsel %vm428, %v414, 0
        %v487 = vsel %vm428, %v415, 0
        %v490 = vsel %vm428, %v416, 0
        %v493 = vsel %vm428, %v417, 0
        %v496 = vsel %vm428, %v418, 0
        %v499 = vsel %vm428, %v419, 0
        %v502 = vsel %vm428, %v420, 0
        %v505 = vsel %vm428, %v421, 0
        %v508 = vsel %vm428, %v422, 0
        %v511 = vsel %vm428, %v423, 0
        %v514 = vsel %vm428, %v424, 0
        %v517 = vsel %vm428, %v425, 0
        %v520 = vsel %vm428, %v426, 0
        %v523 = vsel %vm428, %v427, 0
        %525 = vmatprep.subr.mxu0 0.0
        %526 = vmatpush1.msra.mxu0 0.0
        %527 = vmatprep.subr.mxu0 0.0
        %528 = vmatpush1.msra.mxu0 0.0
        %529 = vmatprep.subr.mxu0 0.0
        %530 = vmatpush1.msra.mxu0 0.0
        %531 = vmatprep.subr.mxu0 0.0
        %532 = vmatpush1.msra.mxu0 0.0
        %533 = vmatprep.subr.mxu0 0.0
        %534 = vmatpush1.msra.mxu0 0.0
        %535 = vmatprep.subr.mxu0 0.0
        %536 = vmatpush1.msra.mxu0 0.0
        %537 = vmatprep.subr.mxu0 0.0
        %538 = vmatpush1.msra.mxu0 0.0
        %539 = vmatprep.subr.mxu0 0.0
        %540 = vmatpush1.msra.mxu0 0.0
        %541 = vmatprep.subr.mxu0 0.0
        %542 = vmatpush1.msra.mxu0 0.0
        %543 = vmatprep.subr.mxu0 0.0
        %544 = vmatpush1.msra.mxu0 0.0
        %545 = vmatprep.subr.mxu0 0.0
        %546 = vmatpush1.msra.mxu0 0.0
        %547 = vmatprep.subr.mxu0 0.0
        %548 = vmatpush1.msra.mxu0 0.0
        %549 = vmatprep.subr.mxu0 0.0
        %550 = vmatpush1.msra.mxu0 0.0
        %551 = vmatprep.subr.mxu0 0.0
        %552 = vmatpush1.msra.mxu0 0.0
        %553 = vmatprep.subr.mxu0 %v326
        %554 = vmatpush1.msra.mxu0 %v324
        %555 = vmatprep.subr.mxu0 %v320
        %556 = vmatpush1.msra.mxu0 %v318
        %557 = vmatprep.subr.mxu0 0.0
        %558 = vmatpush2.msra.mxu0 0.0
        %559 = vmatprep.subr.mxu0 0.0
        %560 = vmatpush2.msra.mxu0 0.0
        %561 = vmatprep.subr.mxu0 0.0
        %562 = vmatpush2.msra.mxu0 0.0
        %563 = vmatprep.subr.mxu0 0.0
        %564 = vmatpush2.msra.mxu0 0.0
        %565 = vmatprep.subr.mxu0 0.0
        %566 = vmatpush2.msra.mxu0 0.0
        %567 = vmatprep.subr.mxu0 0.0
        %568 = vmatpush2.msra.mxu0 0.0
        %569 = vmatprep.subr.mxu0 0.0
        %570 = vmatpush2.msra.mxu0 0.0
        %571 = vmatprep.subr.mxu0 0.0
        %572 = vmatpush2.msra.mxu0 0.0
        %573 = vmatprep.subr.mxu0 0.0
        %574 = vmatpush2.msra.mxu0 0.0
        %575 = vmatprep.subr.mxu0 0.0
        %576 = vmatpush2.msra.mxu0 0.0
        %577 = vmatprep.subr.mxu0 0.0
        %578 = vmatpush2.msra.mxu0 0.0
        %579 = vmatprep.subr.mxu0 0.0
        %580 = vmatpush2.msra.mxu0 0.0
        %581 = vmatprep.subr.mxu0 0.0
        %582 = vmatpush2.msra.mxu0 0.0
        %583 = vmatprep.subr.mxu0 0.0
        %584 = vmatpush2.msra.mxu0 0.0
        %585 = vmatprep.subr.mxu0 0.0
        %586 = vmatpush2.msra.mxu0 0.0
        %587 = vmatprep.subr.mxu0 0.0
        %588 = vmatpush2.msra.mxu0 0.0
        %589 = vmatprep.mubr.f32.mxu0 0.0
        %590 = vmatmul.mubr.f32.gmra.mxu0 %v430
        %v591 = vpop.f32.mrf.mxu0
        %v592 = vadd.f32 0.0, %v591
        %v593 = vpop.f32.mrf.mxu0
        %v594 = vadd.f32 0.0, %v593
        %595 = vmatprep.mubr.f32.mxu0 0.0
        %596 = vmatmul.mubr.f32.gmra.mxu0 %v433
        %v597 = vpop.f32.mrf.mxu0
        %v598 = vadd.f32 0.0, %v597
        %v599 = vpop.f32.mrf.mxu0
        %v600 = vadd.f32 0.0, %v599
        %601 = vmatprep.mubr.f32.mxu0 0.0
        %602 = vmatmul.mubr.f32.gmra.mxu0 %v436
        %v603 = vpop.f32.mrf.mxu0
        %v604 = vadd.f32 0.0, %v603
        %v605 = vpop.f32.mrf.mxu0
        %v606 = vadd.f32 0.0, %v605
        %607 = vmatprep.mubr.f32.mxu0 0.0
        %608 = vmatmul.mubr.f32.gmra.mxu0 %v439
        %v609 = vpop.f32.mrf.mxu0
        %v610 = vadd.f32 0.0, %v609
        %v611 = vpop.f32.mrf.mxu0
        %v612 = vadd.f32 0.0, %v611
        %613 = vmatprep.mubr.f32.mxu0 0.0
        %614 = vmatmul.mubr.f32.gmra.mxu0 %v442
        %v615 = vpop.f32.mrf.mxu0
        %v616 = vadd.f32 0.0, %v615
        %v617 = vpop.f32.mrf.mxu0
        %v618 = vadd.f32 0.0, %v617
        %619 = vmatprep.mubr.f32.mxu0 0.0
        %620 = vmatmul.mubr.f32.gmra.mxu0 %v445
        %v621 = vpop.f32.mrf.mxu0
        %v622 = vadd.f32 0.0, %v621
        %v623 = vpop.f32.mrf.mxu0
        %v624 = vadd.f32 0.0, %v623
        %625 = vmatprep.mubr.f32.mxu0 0.0
        %626 = vmatmul.mubr.f32.gmra.mxu0 %v448
        %v627 = vpop.f32.mrf.mxu0
        %v628 = vadd.f32 0.0, %v627
        %v629 = vpop.f32.mrf.mxu0
        %v630 = vadd.f32 0.0, %v629
        %631 = vmatprep.mubr.f32.mxu0 0.0
        %632 = vmatmul.mubr.f32.gmra.mxu0 %v451
        %v633 = vpop.f32.mrf.mxu0
        %v634 = vadd.f32 0.0, %v633
        %v635 = vpop.f32.mrf.mxu0
        %v636 = vadd.f32 0.0, %v635
        %637 = vmatprep.mubr.f32.mxu0 0.0
        %638 = vmatmul.mubr.f32.gmra.mxu0 %v454
        %v639 = vpop.f32.mrf.mxu0
        %v640 = vadd.f32 0.0, %v639
        %v641 = vpop.f32.mrf.mxu0
        %v642 = vadd.f32 0.0, %v641
        %643 = vmatprep.mubr.f32.mxu0 0.0
        %644 = vmatmul.mubr.f32.gmra.mxu0 %v457
        %v645 = vpop.f32.mrf.mxu0
        %v646 = vadd.f32 0.0, %v645
        %v647 = vpop.f32.mrf.mxu0
        %v648 = vadd.f32 0.0, %v647
        %649 = vmatprep.mubr.f32.mxu0 0.0
        %650 = vmatmul.mubr.f32.gmra.mxu0 %v460
        %v651 = vpop.f32.mrf.mxu0
        %v652 = vadd.f32 0.0, %v651
        %v653 = vpop.f32.mrf.mxu0
        %v654 = vadd.f32 0.0, %v653
        %655 = vmatprep.mubr.f32.mxu0 0.0
        %656 = vmatmul.mubr.f32.gmra.mxu0 %v463
        %v657 = vpop.f32.mrf.mxu0
        %v658 = vadd.f32 0.0, %v657
        %v659 = vpop.f32.mrf.mxu0
        %v660 = vadd.f32 0.0, %v659
        %661 = vmatprep.mubr.f32.mxu0 0.0
        %662 = vmatmul.mubr.f32.gmra.mxu0 %v466
        %v663 = vpop.f32.mrf.mxu0
        %v664 = vadd.f32 0.0, %v663
        %v665 = vpop.f32.mrf.mxu0
        %v666 = vadd.f32 0.0, %v665
        %667 = vmatprep.mubr.f32.mxu0 0.0
        %668 = vmatmul.mubr.f32.gmra.mxu0 %v469
        %v669 = vpop.f32.mrf.mxu0
        %v670 = vadd.f32 0.0, %v669
        %v671 = vpop.f32.mrf.mxu0
        %v672 = vadd.f32 0.0, %v671
        %673 = vmatprep.mubr.f32.mxu0 0.0
        %674 = vmatmul.mubr.f32.gmra.mxu0 %v472
        %v675 = vpop.f32.mrf.mxu0
        %v676 = vadd.f32 0.0, %v675
        %v677 = vpop.f32.mrf.mxu0
        %v678 = vadd.f32 0.0, %v677
        %679 = vmatprep.mubr.f32.mxu0 0.0
        %680 = vmatmul.mubr.f32.gmra.mxu0 %v475
        %v681 = vpop.f32.mrf.mxu0
        %v682 = vadd.f32 0.0, %v681
        %v683 = vpop.f32.mrf.mxu0
        %v684 = vadd.f32 0.0, %v683
        %685 = vmatprep.mubr.f32.mxu0 0.0
        %686 = vmatmul.mubr.f32.gmra.mxu0 %v478
        %v687 = vpop.f32.mrf.mxu0
        %v688 = vadd.f32 0.0, %v687
        %v689 = vpop.f32.mrf.mxu0
        %v690 = vadd.f32 0.0, %v689
        %691 = vmatprep.mubr.f32.mxu0 0.0
        %692 = vmatmul.mubr.f32.gmra.mxu0 %v481
        %v693 = vpop.f32.mrf.mxu0
        %v694 = vadd.f32 0.0, %v693
        %v695 = vpop.f32.mrf.mxu0
        %v696 = vadd.f32 0.0, %v695
        %697 = vmatprep.mubr.f32.mxu0 0.0
        %698 = vmatmul.mubr.f32.gmra.mxu0 %v484
        %v699 = vpop.f32.mrf.mxu0
        %v700 = vadd.f32 0.0, %v699
        %v701 = vpop.f32.mrf.mxu0
        %v702 = vadd.f32 0.0, %v701
        %703 = vmatprep.mubr.f32.mxu0 0.0
        %704 = vmatmul.mubr.f32.gmra.mxu0 %v487
        %v705 = vpop.f32.mrf.mxu0
        %v706 = vadd.f32 0.0, %v705
        %v707 = vpop.f32.mrf.mxu0
        %v708 = vadd.f32 0.0, %v707
        %709 = vmatprep.mubr.f32.mxu0 0.0
        %710 = vmatmul.mubr.f32.gmra.mxu0 %v490
        %v711 = vpop.f32.mrf.mxu0
        %v712 = vadd.f32 0.0, %v711
        %v713 = vpop.f32.mrf.mxu0
        %v714 = vadd.f32 0.0, %v713
        %715 = vmatprep.mubr.f32.mxu0 0.0
        %716 = vmatmul.mubr.f32.gmra.mxu0 %v493
        %v717 = vpop.f32.mrf.mxu0
        %v718 = vadd.f32 0.0, %v717
        %v719 = vpop.f32.mrf.mxu0
        %v720 = vadd.f32 0.0, %v719
        %721 = vmatprep.mubr.f32.mxu0 0.0
        %722 = vmatmul.mubr.f32.gmra.mxu0 %v496
        %v723 = vpop.f32.mrf.mxu0
        %v724 = vadd.f32 0.0, %v723
        %v725 = vpop.f32.mrf.mxu0
        %v726 = vadd.f32 0.0, %v725
        %727 = vmatprep.mubr.f32.mxu0 0.0
        %728 = vmatmul.mubr.f32.gmra.mxu0 %v499
        %v729 = vpop.f32.mrf.mxu0
        %v730 = vadd.f32 0.0, %v729
        %v731 = vpop.f32.mrf.mxu0
        %v732 = vadd.f32 0.0, %v731
        %733 = vmatprep.mubr.f32.mxu0 0.0
        %734 = vmatmul.mubr.f32.gmra.mxu0 %v502
        %v735 = vpop.f32.mrf.mxu0
        %v736 = vadd.f32 0.0, %v735
        %v737 = vpop.f32.mrf.mxu0
        %v738 = vadd.f32 0.0, %v737
        %739 = vmatprep.mubr.f32.mxu0 0.0
        %740 = vmatmul.mubr.f32.gmra.mxu0 %v505
        %v741 = vpop.f32.mrf.mxu0
        %v742 = vadd.f32 0.0, %v741
        %v743 = vpop.f32.mrf.mxu0
        %v744 = vadd.f32 0.0, %v743
        %745 = vmatprep.mubr.f32.mxu0 0.0
        %746 = vmatmul.mubr.f32.gmra.mxu0 %v508
        %v747 = vpop.f32.mrf.mxu0
        %v748 = vadd.f32 0.0, %v747
        %v749 = vpop.f32.mrf.mxu0
        %v750 = vadd.f32 0.0, %v749
        %751 = vmatprep.mubr.f32.mxu0 0.0
        %752 = vmatmul.mubr.f32.gmra.mxu0 %v511
        %v753 = vpop.f32.mrf.mxu0
        %v754 = vadd.f32 0.0, %v753
        %v755 = vpop.f32.mrf.mxu0
        %v756 = vadd.f32 0.0, %v755
        %757 = vmatprep.mubr.f32.mxu0 0.0
        %758 = vmatmul.mubr.f32.gmra.mxu0 %v514
        %v759 = vpop.f32.mrf.mxu0
        %v760 = vadd.f32 0.0, %v759
        %v761 = vpop.f32.mrf.mxu0
        %v762 = vadd.f32 0.0, %v761
        %763 = vmatprep.mubr.f32.mxu0 0.0
        %764 = vmatmul.mubr.f32.gmra.mxu0 %v517
        %v765 = vpop.f32.mrf.mxu0
        %v766 = vadd.f32 0.0, %v765
        %v767 = vpop.f32.mrf.mxu0
        %v768 = vadd.f32 0.0, %v767
        %769 = vmatprep.mubr.f32.mxu0 0.0
        %770 = vmatmul.mubr.f32.gmra.mxu0 %v520
        %v771 = vpop.f32.mrf.mxu0
        %v772 = vadd.f32 0.0, %v771
        %v773 = vpop.f32.mrf.mxu0
        %v774 = vadd.f32 0.0, %v773
        %775 = vmatprep.mubr.f32.mxu0 0.0
        %776 = vmatmul.mubr.f32.gmra.mxu0 %v523
        %v777 = vpop.f32.mrf.mxu0
        %v778 = vadd.f32 0.0, %v777
        %v779 = vpop.f32.mrf.mxu0
        %v780 = vadd.f32 0.0, %v779
        %781 = vdwg.mxu0
        %v782 = vmax.f32 %v592, %v594
        %783 = vmax.xlane.f32.xlu0 %v782
        %v784 = vpop.xlane.xlu0 %783
        %v785 = vmax.f32 %v598, %v600
        %786 = vmax.xlane.f32.xlu0 %v785
        %v787 = vpop.xlane.xlu0 %786
        %v788 = vmax.f32 %v604, %v606
        %789 = vmax.xlane.f32.xlu0 %v788
        %v790 = vpop.xlane.xlu0 %789
        %v791 = vmax.f32 %v610, %v612
        %792 = vmax.xlane.f32.xlu0 %v791
        %v793 = vpop.xlane.xlu0 %792
        %v794 = vmax.f32 %v616, %v618
        %795 = vmax.xlane.f32.xlu0 %v794
        %v796 = vpop.xlane.xlu0 %795
        %v797 = vmax.f32 %v622, %v624
        %798 = vmax.xlane.f32.xlu0 %v797
        %v799 = vpop.xlane.xlu0 %798
        %v800 = vmax.f32 %v628, %v630
        %801 = vmax.xlane.f32.xlu0 %v800
        %v802 = vpop.xlane.xlu0 %801
        %v803 = vmax.f32 %v634, %v636
        %804 = vmax.xlane.f32.xlu0 %v803
        %v805 = vpop.xlane.xlu0 %804
        %v806 = vmax.f32 %v640, %v642
        %807 = vmax.xlane.f32.xlu0 %v806
        %v808 = vpop.xlane.xlu0 %807
        %v809 = vmax.f32 %v646, %v648
        %810 = vmax.xlane.f32.xlu0 %v809
        %v811 = vpop.xlane.xlu0 %810
        %v812 = vmax.f32 %v652, %v654
        %813 = vmax.xlane.f32.xlu0 %v812
        %v814 = vpop.xlane.xlu0 %813
        %v815 = vmax.f32 %v658, %v660
        %816 = vmax.xlane.f32.xlu0 %v815
        %v817 = vpop.xlane.xlu0 %816
        %v818 = vmax.f32 %v664, %v666
        %819 = vmax.xlane.f32.xlu0 %v818
        %v820 = vpop.xlane.xlu0 %819
        %v821 = vmax.f32 %v670, %v672
        %822 = vmax.xlane.f32.xlu0 %v821
        %v823 = vpop.xlane.xlu0 %822
        %v824 = vmax.f32 %v676, %v678
        %825 = vmax.xlane.f32.xlu0 %v824
        %v826 = vpop.xlane.xlu0 %825
        %v827 = vmax.f32 %v682, %v684
        %828 = vmax.xlane.f32.xlu0 %v827
        %v829 = vpop.xlane.xlu0 %828
        %v830 = vmax.f32 %v688, %v690
        %831 = vmax.xlane.f32.xlu0 %v830
        %v832 = vpop.xlane.xlu0 %831
        %v833 = vmax.f32 %v694, %v696
        %834 = vmax.xlane.f32.xlu0 %v833
        %v835 = vpop.xlane.xlu0 %834
        %v836 = vmax.f32 %v700, %v702
        %837 = vmax.xlane.f32.xlu0 %v836
        %v838 = vpop.xlane.xlu0 %837
        %v839 = vmax.f32 %v706, %v708
        %840 = vmax.xlane.f32.xlu0 %v839
        %v841 = vpop.xlane.xlu0 %840
        %v842 = vmax.f32 %v712, %v714
        %843 = vmax.xlane.f32.xlu0 %v842
        %v844 = vpop.xlane.xlu0 %843
        %v845 = vmax.f32 %v718, %v720
        %846 = vmax.xlane.f32.xlu0 %v845
        %v847 = vpop.xlane.xlu0 %846
        %v848 = vmax.f32 %v724, %v726
        %849 = vmax.xlane.f32.xlu0 %v848
        %v850 = vpop.xlane.xlu0 %849
        %v851 = vmax.f32 %v730, %v732
        %852 = vmax.xlane.f32.xlu0 %v851
        %v853 = vpop.xlane.xlu0 %852
        %v854 = vmax.f32 %v736, %v738
        %855 = vmax.xlane.f32.xlu0 %v854
        %v856 = vpop.xlane.xlu0 %855
        %v857 = vmax.f32 %v742, %v744
        %858 = vmax.xlane.f32.xlu0 %v857
        %v859 = vpop.xlane.xlu0 %858
        %v860 = vmax.f32 %v748, %v750
        %861 = vmax.xlane.f32.xlu0 %v860
        %v862 = vpop.xlane.xlu0 %861
        %v863 = vmax.f32 %v754, %v756
        %864 = vmax.xlane.f32.xlu0 %v863
        %v865 = vpop.xlane.xlu0 %864
        %v866 = vmax.f32 %v760, %v762
        %867 = vmax.xlane.f32.xlu0 %v866
        %v868 = vpop.xlane.xlu0 %867
        %v869 = vmax.f32 %v766, %v768
        %870 = vmax.xlane.f32.xlu0 %v869
        %v871 = vpop.xlane.xlu0 %870
        %v872 = vmax.f32 %v772, %v774
        %873 = vmax.xlane.f32.xlu0 %v872
        %v874 = vpop.xlane.xlu0 %873
        %v875 = vmax.f32 %v778, %v780
        %876 = vmax.xlane.f32.xlu0 %v875
        %v877 = vpop.xlane.xlu0 %876
        %v878 = vsub.f32 %v592, %v784
        %v879 = vsub.f32 %v594, %v784
        %v880 = vsub.f32 %v598, %v787
        %v881 = vsub.f32 %v600, %v787
        %v882 = vsub.f32 %v604, %v790
        %v883 = vsub.f32 %v606, %v790
        %v884 = vsub.f32 %v610, %v793
        %v885 = vsub.f32 %v612, %v793
        %v886 = vsub.f32 %v616, %v796
        %v887 = vsub.f32 %v618, %v796
        %v888 = vsub.f32 %v622, %v799
        %v889 = vsub.f32 %v624, %v799
        %v890 = vsub.f32 %v628, %v802
        %v891 = vsub.f32 %v630, %v802
        %v892 = vsub.f32 %v634, %v805
        %v893 = vsub.f32 %v636, %v805
        %v894 = vsub.f32 %v640, %v808
        %v895 = vsub.f32 %v642, %v808
        %v896 = vsub.f32 %v646, %v811
        %v897 = vsub.f32 %v648, %v811
        %v898 = vsub.f32 %v652, %v814
        %v899 = vsub.f32 %v654, %v814
        %v900 = vsub.f32 %v658, %v817
        %v901 = vsub.f32 %v660, %v817
        %v902 = vsub.f32 %v664, %v820
        %v903 = vsub.f32 %v666, %v820
        %v904 = vsub.f32 %v670, %v823
        %v905 = vsub.f32 %v672, %v823
        %v906 = vsub.f32 %v676, %v826
        %v907 = vsub.f32 %v678, %v826
        %v908 = vsub.f32 %v682, %v829
        %v909 = vsub.f32 %v684, %v829
        %v910 = vsub.f32 %v688, %v832
        %v911 = vsub.f32 %v690, %v832
        %v912 = vsub.f32 %v694, %v835
        %v913 = vsub.f32 %v696, %v835
        %v914 = vsub.f32 %v700, %v838
        %v915 = vsub.f32 %v702, %v838
        %v916 = vsub.f32 %v706, %v841
        %v917 = vsub.f32 %v708, %v841
        %v918 = vsub.f32 %v712, %v844
        %v919 = vsub.f32 %v714, %v844
        %v920 = vsub.f32 %v718, %v847
        %v921 = vsub.f32 %v720, %v847
        %v922 = vsub.f32 %v724, %v850
        %v923 = vsub.f32 %v726, %v850
        %v924 = vsub.f32 %v730, %v853
        %v925 = vsub.f32 %v732, %v853
        %v926 = vsub.f32 %v736, %v856
        %v927 = vsub.f32 %v738, %v856
        %v928 = vsub.f32 %v742, %v859
        %v929 = vsub.f32 %v744, %v859
        %v930 = vsub.f32 %v748, %v862
        %v931 = vsub.f32 %v750, %v862
        %v932 = vsub.f32 %v754, %v865
        %v933 = vsub.f32 %v756, %v865
        %v934 = vsub.f32 %v760, %v868
        %v935 = vsub.f32 %v762, %v868
        %v936 = vsub.f32 %v766, %v871
        %v937 = vsub.f32 %v768, %v871
        %v938 = vsub.f32 %v772, %v874
        %v939 = vsub.f32 %v774, %v874
        %v940 = vsub.f32 %v778, %v877
        %v941 = vsub.f32 %v780, %v877
        %v942 = vmul.f32 %v878, 1.442695
        %v943 = vpow.pop %v942
        %v944 = vmul.f32 %v879, 1.442695
        %v945 = vpow.pop %v944
        %v946 = vmul.f32 %v880, 1.442695
        %v947 = vpow.pop %v946
        %v948 = vmul.f32 %v881, 1.442695
        %v949 = vpow.pop %v948
        %v950 = vmul.f32 %v882, 1.442695
        %v951 = vpow.pop %v950
        %v952 = vmul.f32 %v883, 1.442695
        %v953 = vpow.pop %v952
        %v954 = vmul.f32 %v884, 1.442695
        %v955 = vpow.pop %v954
        %v956 = vmul.f32 %v885, 1.442695
        %v957 = vpow.pop %v956
        %v958 = vmul.f32 %v886, 1.442695
        %v959 = vpow.pop %v958
        %v960 = vmul.f32 %v887, 1.442695
        %v961 = vpow.pop %v960
        %v962 = vmul.f32 %v888, 1.442695
        %v963 = vpow.pop %v962
        %v964 = vmul.f32 %v889, 1.442695
        %v965 = vpow.pop %v964
        %v966 = vmul.f32 %v890, 1.442695
        %v967 = vpow.pop %v966
        %v968 = vmul.f32 %v891, 1.442695
        %v969 = vpow.pop %v968
        %v970 = vmul.f32 %v892, 1.442695
        %v971 = vpow.pop %v970
        %v972 = vmul.f32 %v893, 1.442695
        %v973 = vpow.pop %v972
        %v974 = vmul.f32 %v894, 1.442695
        %v975 = vpow.pop %v974
        %v976 = vmul.f32 %v895, 1.442695
        %v977 = vpow.pop %v976
        %v978 = vmul.f32 %v896, 1.442695
        %v979 = vpow.pop %v978
        %v980 = vmul.f32 %v897, 1.442695
        %v981 = vpow.pop %v980
        %v982 = vmul.f32 %v898, 1.442695
        %v983 = vpow.pop %v982
        %v984 = vmul.f32 %v899, 1.442695
        %v985 = vpow.pop %v984
        %v986 = vmul.f32 %v900, 1.442695
        %v987 = vpow.pop %v986
        %v988 = vmul.f32 %v901, 1.442695
        %v989 = vpow.pop %v988
        %v990 = vmul.f32 %v902, 1.442695
        %v991 = vpow.pop %v990
        %v992 = vmul.f32 %v903, 1.442695
        %v993 = vpow.pop %v992
        %v994 = vmul.f32 %v904, 1.442695
        %v995 = vpow.pop %v994
        %v996 = vmul.f32 %v905, 1.442695
        %v997 = vpow.pop %v996
        %v998 = vmul.f32 %v906, 1.442695
        %v999 = vpow.pop %v998
        %v1000 = vmul.f32 %v907, 1.442695
        %v1001 = vpow.pop %v1000
        %v1002 = vmul.f32 %v908, 1.442695
        %v1003 = vpow.pop %v1002
        %v1004 = vmul.f32 %v909, 1.442695
        %v1005 = vpow.pop %v1004
        %v1006 = vmul.f32 %v910, 1.442695
        %v1007 = vpow.pop %v1006
        %v1008 = vmul.f32 %v911, 1.442695
        %v1009 = vpow.pop %v1008
        %v1010 = vmul.f32 %v912, 1.442695
        %v1011 = vpow.pop %v1010
        %v1012 = vmul.f32 %v913, 1.442695
        %v1013 = vpow.pop %v1012
        %v1014 = vmul.f32 %v914, 1.442695
        %v1015 = vpow.pop %v1014
        %v1016 = vmul.f32 %v915, 1.442695
        %v1017 = vpow.pop %v1016
        %v1018 = vmul.f32 %v916, 1.442695
        %v1019 = vpow.pop %v1018
        %v1020 = vmul.f32 %v917, 1.442695
        %v1021 = vpow.pop %v1020
        %v1022 = vmul.f32 %v918, 1.442695
        %v1023 = vpow.pop %v1022
        %v1024 = vmul.f32 %v919, 1.442695
        %v1025 = vpow.pop %v1024
        %v1026 = vmul.f32 %v920, 1.442695
        %v1027 = vpow.pop %v1026
        %v1028 = vmul.f32 %v921, 1.442695
        %v1029 = vpow.pop %v1028
        %v1030 = vmul.f32 %v922, 1.442695
        %v1031 = vpow.pop %v1030
        %v1032 = vmul.f32 %v923, 1.442695
        %v1033 = vpow.pop %v1032
        %v1034 = vmul.f32 %v924, 1.442695
        %v1035 = vpow.pop %v1034
        %v1036 = vmul.f32 %v925, 1.442695
        %v1037 = vpow.pop %v1036
        %v1038 = vmul.f32 %v926, 1.442695
        %v1039 = vpow.pop %v1038
        %v1040 = vmul.f32 %v927, 1.442695
        %v1041 = vpow.pop %v1040
        %v1042 = vmul.f32 %v928, 1.442695
        %v1043 = vpow.pop %v1042
        %v1044 = vmul.f32 %v929, 1.442695
        %v1045 = vpow.pop %v1044
        %v1046 = vmul.f32 %v930, 1.442695
        %v1047 = vpow.pop %v1046
        %v1048 = vmul.f32 %v931, 1.442695
        %v1049 = vpow.pop %v1048
        %v1050 = vmul.f32 %v932, 1.442695
        %v1051 = vpow.pop %v1050
        %v1052 = vmul.f32 %v933, 1.442695
        %v1053 = vpow.pop %v1052
        %v1054 = vmul.f32 %v934, 1.442695
        %v1055 = vpow.pop %v1054
        %v1056 = vmul.f32 %v935, 1.442695
        %v1057 = vpow.pop %v1056
        %v1058 = vmul.f32 %v936, 1.442695
        %v1059 = vpow.pop %v1058
        %v1060 = vmul.f32 %v937, 1.442695
        %v1061 = vpow.pop %v1060
        %v1062 = vmul.f32 %v938, 1.442695
        %v1063 = vpow.pop %v1062
        %v1064 = vmul.f32 %v939, 1.442695
        %v1065 = vpow.pop %v1064
        %v1066 = vmul.f32 %v940, 1.442695
        %v1067 = vpow.pop %v1066
        %v1068 = vmul.f32 %v941, 1.442695
        %v1069 = vpow.pop %v1068
        %1070 = vmatprep.subr.mxu0 %v1005
        %1071 = vmatpush1.xpose.msra.mxu0 %v1003
        %1072 = vmatprep.subr.mxu0 %v1001
        %1073 = vmatpush1.xpose.msra.mxu0 %v999
        %1074 = vmatprep.subr.mxu0 %v997
        %1075 = vmatpush1.xpose.msra.mxu0 %v995
        %1076 = vmatprep.subr.mxu0 %v993
        %1077 = vmatpush1.xpose.msra.mxu0 %v991
        %1078 = vmatprep.subr.mxu0 %v989
        %1079 = vmatpush1.xpose.msra.mxu0 %v987
        %1080 = vmatprep.subr.mxu0 %v985
        %1081 = vmatpush1.xpose.msra.mxu0 %v983
        %1082 = vmatprep.subr.mxu0 %v981
        %1083 = vmatpush1.xpose.msra.mxu0 %v979
        %1084 = vmatprep.subr.mxu0 %v977
        %1085 = vmatpush1.xpose.msra.mxu0 %v975
        %1086 = vmatprep.subr.mxu0 %v973
        %1087 = vmatpush1.xpose.msra.mxu0 %v971
        %1088 = vmatprep.subr.mxu0 %v969
        %1089 = vmatpush1.xpose.msra.mxu0 %v967
        %1090 = vmatprep.subr.mxu0 %v965
        %1091 = vmatpush1.xpose.msra.mxu0 %v963
        %1092 = vmatprep.subr.mxu0 %v961
        %1093 = vmatpush1.xpose.msra.mxu0 %v959
        %1094 = vmatprep.subr.mxu0 %v957
        %1095 = vmatpush1.xpose.msra.mxu0 %v955
        %1096 = vmatprep.subr.mxu0 %v953
        %1097 = vmatpush1.xpose.msra.mxu0 %v951
        %1098 = vmatprep.subr.mxu0 %v949
        %1099 = vmatpush1.xpose.msra.mxu0 %v947
        %1100 = vmatprep.subr.mxu0 %v945
        %1101 = vmatpush1.xpose.msra.mxu0 %v943
        %1102 = vmatprep.subr.mxu0 %v1069
        %1103 = vmatpush2.xpose.msra.mxu0 %v1067
        %1104 = vmatprep.subr.mxu0 %v1065
        %1105 = vmatpush2.xpose.msra.mxu0 %v1063
        %1106 = vmatprep.subr.mxu0 %v1061
        %1107 = vmatpush2.xpose.msra.mxu0 %v1059
        %1108 = vmatprep.subr.mxu0 %v1057
        %1109 = vmatpush2.xpose.msra.mxu0 %v1055
        %1110 = vmatprep.subr.mxu0 %v1053
        %1111 = vmatpush2.xpose.msra.mxu0 %v1051
        %1112 = vmatprep.subr.mxu0 %v1049
        %1113 = vmatpush2.xpose.msra.mxu0 %v1047
        %1114 = vmatprep.subr.mxu0 %v1045
        %1115 = vmatpush2.xpose.msra.mxu0 %v1043
        %1116 = vmatprep.subr.mxu0 %v1041
        %1117 = vmatpush2.xpose.msra.mxu0 %v1039
        %1118 = vmatprep.subr.mxu0 %v1037
        %1119 = vmatpush2.xpose.msra.mxu0 %v1035
        %1120 = vmatprep.subr.mxu0 %v1033
        %1121 = vmatpush2.xpose.msra.mxu0 %v1031
        %1122 = vmatprep.subr.mxu0 %v1029
        %1123 = vmatpush2.xpose.msra.mxu0 %v1027
        %1124 = vmatprep.subr.mxu0 %v1025
        %1125 = vmatpush2.xpose.msra.mxu0 %v1023
        %1126 = vmatprep.subr.mxu0 %v1021
        %1127 = vmatpush2.xpose.msra.mxu0 %v1019
        %1128 = vmatprep.subr.mxu0 %v1017
        %1129 = vmatpush2.xpose.msra.mxu0 %v1015
        %1130 = vmatprep.subr.mxu0 %v1013
        %1131 = vmatpush2.xpose.msra.mxu0 %v1011
        %1132 = vmatprep.subr.mxu0 %v1009
        %1133 = vmatpush2.xpose.msra.mxu0 %v1007
        %1134 = vmatprep.mubr.f32.mxu0 1.0
        %1135 = vmatmul.mubr.f32.gmra.mxu0 1.0
        %v1136 = vpop.f32.mrf.mxu0
        %v1137 = vadd.f32 0.0, %v1136
        %v1138 = vpop.f32.mrf.mxu0
        %v1139 = vadd.f32 0.0, %v1138
        %1140 = vdwg.mxu0
        %v1142 = vsel %vm428, %v182, 0
        %1144 = vmatprep.subr.mxu0 0.0
        %1145 = vmatpush1.msra.mxu0 0.0
        %1146 = vmatprep.subr.mxu0 0.0
        %1147 = vmatpush1.msra.mxu0 0.0
        %1148 = vmatprep.subr.mxu0 0.0
        %1149 = vmatpush1.msra.mxu0 0.0
        %1150 = vmatprep.subr.mxu0 0.0
        %1151 = vmatpush1.msra.mxu0 0.0
        %1152 = vmatprep.subr.mxu0 0.0
        %1153 = vmatpush1.msra.mxu0 0.0
        %1154 = vmatprep.subr.mxu0 0.0
        %1155 = vmatpush1.msra.mxu0 0.0
        %1156 = vmatprep.subr.mxu0 0.0
        %1157 = vmatpush1.msra.mxu0 0.0
        %1158 = vmatprep.subr.mxu0 0.0
        %1159 = vmatpush1.msra.mxu0 0.0
        %1160 = vmatprep.subr.mxu0 0.0
        %1161 = vmatpush1.msra.mxu0 0.0
        %1162 = vmatprep.subr.mxu0 0.0
        %1163 = vmatpush1.msra.mxu0 0.0
        %1164 = vmatprep.subr.mxu0 0.0
        %1165 = vmatpush1.msra.mxu0 0.0
        %1166 = vmatprep.subr.mxu0 0.0
        %1167 = vmatpush1.msra.mxu0 0.0
        %1168 = vmatprep.subr.mxu0 0.0
        %1169 = vmatpush1.msra.mxu0 0.0
        %1170 = vmatprep.subr.mxu0 0.0
        %1171 = vmatpush1.msra.mxu0 0.0
        %1172 = vmatprep.subr.mxu0 %v350
        %1173 = vmatpush1.msra.mxu0 %v348
        %1174 = vmatprep.subr.mxu0 %v344
        %1175 = vmatpush1.msra.mxu0 %v342
        %1176 = vmatprep.subr.mxu0 0.0
        %1177 = vmatpush2.msra.mxu0 0.0
        %1178 = vmatprep.subr.mxu0 0.0
        %1179 = vmatpush2.msra.mxu0 0.0
        %1180 = vmatprep.subr.mxu0 0.0
        %1181 = vmatpush2.msra.mxu0 0.0
        %1182 = vmatprep.subr.mxu0 0.0
        %1183 = vmatpush2.msra.mxu0 0.0
        %1184 = vmatprep.subr.mxu0 0.0
        %1185 = vmatpush2.msra.mxu0 0.0
        %1186 = vmatprep.subr.mxu0 0.0
        %1187 = vmatpush2.msra.mxu0 0.0
        %1188 = vmatprep.subr.mxu0 0.0
        %1189 = vmatpush2.msra.mxu0 0.0
        %1190 = vmatprep.subr.mxu0 0.0
        %1191 = vmatpush2.msra.mxu0 0.0
        %1192 = vmatprep.subr.mxu0 0.0
        %1193 = vmatpush2.msra.mxu0 0.0
        %1194 = vmatprep.subr.mxu0 0.0
        %1195 = vmatpush2.msra.mxu0 0.0
        %1196 = vmatprep.subr.mxu0 0.0
        %1197 = vmatpush2.msra.mxu0 0.0
        %1198 = vmatprep.subr.mxu0 0.0
        %1199 = vmatpush2.msra.mxu0 0.0
        %1200 = vmatprep.subr.mxu0 0.0
        %1201 = vmatpush2.msra.mxu0 0.0
        %1202 = vmatprep.subr.mxu0 0.0
        %1203 = vmatpush2.msra.mxu0 0.0
        %1204 = vmatprep.subr.mxu0 0.0
        %1205 = vmatpush2.msra.mxu0 0.0
        %1206 = vmatprep.subr.mxu0 0.0
        %1207 = vmatpush2.msra.mxu0 0.0
        %1208 = vmatprep.mubr.f32.mxu0 0.0
        %1209 = vmatmul.mubr.f32.gmra.mxu0 %v1142
        %v1210 = vpop.f32.mrf.mxu0
        %v1211 = vadd.f32 0.0, %v1210
        %v1212 = vpop.f32.mrf.mxu0
        %v1213 = vadd.f32 0.0, %v1212
        %1214 = vdwg.mxu0
        %v1215 = vpack.c.bf16 %v1211, %v1211
        %v1216 = vpack.c.bf16 %v1213, %v1213
        %v1217 = vpack.c.bf16 %v947, %v943
        %v1218 = vpack.c.bf16 %v949, %v945
        %v1219 = vpack.c.bf16 %v955, %v951
        %v1220 = vpack.c.bf16 %v957, %v953
        %v1221 = vpack.c.bf16 %v963, %v959
        %v1222 = vpack.c.bf16 %v965, %v961
        %v1223 = vpack.c.bf16 %v971, %v967
        %v1224 = vpack.c.bf16 %v973, %v969
        %v1225 = vpack.c.bf16 %v979, %v975
        %v1226 = vpack.c.bf16 %v981, %v977
        %v1227 = vpack.c.bf16 %v987, %v983
        %v1228 = vpack.c.bf16 %v989, %v985
        %v1229 = vpack.c.bf16 %v995, %v991
        %v1230 = vpack.c.bf16 %v997, %v993
        %v1231 = vpack.c.bf16 %v1003, %v999
        %v1232 = vpack.c.bf16 %v1005, %v1001
        %v1233 = vpack.c.bf16 %v1011, %v1007
        %v1234 = vpack.c.bf16 %v1013, %v1009
        %v1235 = vpack.c.bf16 %v1019, %v1015
        %v1236 = vpack.c.bf16 %v1021, %v1017
        %v1237 = vpack.c.bf16 %v1027, %v1023
        %v1238 = vpack.c.bf16 %v1029, %v1025
        %v1239 = vpack.c.bf16 %v1035, %v1031
        %v1240 = vpack.c.bf16 %v1037, %v1033
        %v1241 = vpack.c.bf16 %v1043, %v1039
        %v1242 = vpack.c.bf16 %v1045, %v1041
        %v1243 = vpack.c.bf16 %v1051, %v1047
        %v1244 = vpack.c.bf16 %v1053, %v1049
        %v1245 = vpack.c.bf16 %v1059, %v1055
        %v1246 = vpack.c.bf16 %v1061, %v1057
        %v1247 = vpack.c.bf16 %v1067, %v1063
        %v1248 = vpack.c.bf16 %v1069, %v1065
        %1249 = vmatprep.subr.bf16.mxu0 %v1232
        %1250 = vmatpush1.bf16.xpose.msra.mxu0 %v1231
        %1251 = vmatprep.subr.bf16.mxu0 %v1230
        %1252 = vmatpush1.bf16.xpose.msra.mxu0 %v1229
        %1253 = vmatprep.subr.bf16.mxu0 %v1228
        %1254 = vmatpush1.bf16.xpose.msra.mxu0 %v1227
        %1255 = vmatprep.subr.bf16.mxu0 %v1226
        %1256 = vmatpush1.bf16.xpose.msra.mxu0 %v1225
        %1257 = vmatprep.subr.bf16.mxu0 %v1224
        %1258 = vmatpush1.bf16.xpose.msra.mxu0 %v1223
        %1259 = vmatprep.subr.bf16.mxu0 %v1222
        %1260 = vmatpush1.bf16.xpose.msra.mxu0 %v1221
        %1261 = vmatprep.subr.bf16.mxu0 %v1220
        %1262 = vmatpush1.bf16.xpose.msra.mxu0 %v1219
        %1263 = vmatprep.subr.bf16.mxu0 %v1218
        %1264 = vmatpush1.bf16.xpose.msra.mxu0 %v1217
        %1265 = vmatprep.subr.bf16.mxu0 %v1248
        %1266 = vmatpush2.bf16.xpose.msra.mxu0 %v1247
        %1267 = vmatprep.subr.bf16.mxu0 %v1246
        %1268 = vmatpush2.bf16.xpose.msra.mxu0 %v1245
        %1269 = vmatprep.subr.bf16.mxu0 %v1244
        %1270 = vmatpush2.bf16.xpose.msra.mxu0 %v1243
        %1271 = vmatprep.subr.bf16.mxu0 %v1242
        %1272 = vmatpush2.bf16.xpose.msra.mxu0 %v1241
        %1273 = vmatprep.subr.bf16.mxu0 %v1240
        %1274 = vmatpush2.bf16.xpose.msra.mxu0 %v1239
        %1275 = vmatprep.subr.bf16.mxu0 %v1238
        %1276 = vmatpush2.bf16.xpose.msra.mxu0 %v1237
        %1277 = vmatprep.subr.bf16.mxu0 %v1236
        %1278 = vmatpush2.bf16.xpose.msra.mxu0 %v1235
        %1279 = vmatprep.subr.bf16.mxu0 %v1234
        %1280 = vmatpush2.bf16.xpose.msra.mxu0 %v1233
        %1281 = vmatprep.mubr.bf16.mxu0 %v1216
        %1282 = vmatmul.mubr.bf16.gmra.mxu0 %v1215
        %v1283 = vpop.f32.mrf.mxu0
        %v1284 = vadd.f32 0.0, %v1283
        %v1285 = vpop.f32.mrf.mxu0
        %v1286 = vadd.f32 0.0, %v1285
        %v1287 = vpop.f32.mrf.mxu0
        %v1288 = vpop.f32.mrf.mxu0
        %1289 = vdwg.mxu0
        %v1290 = vrcp.pop %v1137
        %v1291 = vrcp.pop %v1139
        %v1292 = vlaneseq
        %v1293 = vshrl.u32 %v1292, 7
        %v1294 = vsub.s32 0, %v1293
        %v1295 = vrot.slane %v1290, %v1294
        %v1296 = vlaneseq
        %v1297 = vshrl.u32 %v1296, 7
        %v1298 = vsub.s32 0, %v1297
        %v1299 = vrot.slane %v1291, %v1298
        %v1300 = vmul.f32 %v1284, %v1295
        %v1301 = vmul.f32 %v1286, %v1299
        %v1302 = vadd.f32 %v1300, 0.0
        %v1303 = vadd.f32 %v1301, 0.0
        %1304 = vxpose.xlu0.b32.start [1/16] %v306, 128
        %1305 = vxpose.xlu0.b32.cont [2/16] %v312, 128
        %1306 = vxpose.xlu0.b32.cont [3/16] 0.0, 128
        %1307 = vxpose.xlu0.b32.cont [4/16] 0.0, 128
        %1308 = vxpose.xlu0.b32.cont [5/16] 0.0, 128
        %1309 = vxpose.xlu0.b32.cont [6/16] 0.0, 128
        %1310 = vxpose.xlu0.b32.cont [7/16] 0.0, 128
        %1311 = vxpose.xlu0.b32.cont [8/16] 0.0, 128
        %1312 = vxpose.xlu0.b32.cont [9/16] 0.0, 128
        %1313 = vxpose.xlu0.b32.cont [10/16] 0.0, 128
        %1314 = vxpose.xlu0.b32.cont [11/16] 0.0, 128
        %1315 = vxpose.xlu0.b32.cont [12/16] 0.0, 128
        %1316 = vxpose.xlu0.b32.cont [13/16] 0.0, 128
        %1317 = vxpose.xlu0.b32.cont [14/16] 0.0, 128
        %1318 = vxpose.xlu0.b32.cont [15/16] 0.0, 128
        %1319 = vxpose.xlu0.b32.end [16/16] 0.0, 128
        %v1320 = vpop.trf.xlu0
        %v1321 = vpop.trf.xlu0
        %v1322 = vpop.trf.xlu0
        %v1323 = vpop.trf.xlu0
        %v1324 = vpop.trf.xlu0
        %v1325 = vpop.trf.xlu0
        %v1326 = vpop.trf.xlu0
        %v1327 = vpop.trf.xlu0
        %v1328 = vpop.trf.xlu0
        %v1329 = vpop.trf.xlu0
        %v1330 = vpop.trf.xlu0
        %v1331 = vpop.trf.xlu0
        %v1332 = vpop.trf.xlu0
        %v1333 = vpop.trf.xlu0
        %v1334 = vpop.trf.xlu0
        %v1335 = vpop.trf.xlu0
        %1336 = vxpose.xlu0.b32.start [1/16] %v308, 128
        %1337 = vxpose.xlu0.b32.cont [2/16] %v314, 128
        %1338 = vxpose.xlu0.b32.cont [3/16] 0.0, 128
        %1339 = vxpose.xlu0.b32.cont [4/16] 0.0, 128
        %1340 = vxpose.xlu0.b32.cont [5/16] 0.0, 128
        %1341 = vxpose.xlu0.b32.cont [6/16] 0.0, 128
        %1342 = vxpose.xlu0.b32.cont [7/16] 0.0, 128
        %1343 = vxpose.xlu0.b32.cont [8/16] 0.0, 128
        %1344 = vxpose.xlu0.b32.cont [9/16] 0.0, 128
        %1345 = vxpose.xlu0.b32.cont [10/16] 0.0, 128
        %1346 = vxpose.xlu0.b32.cont [11/16] 0.0, 128
        %1347 = vxpose.xlu0.b32.cont [12/16] 0.0, 128
        %1348 = vxpose.xlu0.b32.cont [13/16] 0.0, 128
        %1349 = vxpose.xlu0.b32.cont [14/16] 0.0, 128
        %1350 = vxpose.xlu0.b32.cont [15/16] 0.0, 128
        %1351 = vxpose.xlu0.b32.end [16/16] 0.0, 128
        %v1352 = vpop.trf.xlu0
        %v1353 = vpop.trf.xlu0
        %v1354 = vpop.trf.xlu0
        %v1355 = vpop.trf.xlu0
        %v1356 = vpop.trf.xlu0
        %v1357 = vpop.trf.xlu0
        %v1358 = vpop.trf.xlu0
        %v1359 = vpop.trf.xlu0
        %v1360 = vpop.trf.xlu0
        %v1361 = vpop.trf.xlu0
        %v1362 = vpop.trf.xlu0
        %v1363 = vpop.trf.xlu0
        %v1364 = vpop.trf.xlu0
        %v1365 = vpop.trf.xlu0
        %v1366 = vpop.trf.xlu0
        %v1367 = vpop.trf.xlu0
        %v1369 = vsel %vm428, %v1320, 0
        %v1372 = vsel %vm428, %v1321, 0
        %v1375 = vsel %vm428, %v1322, 0
        %v1378 = vsel %vm428, %v1323, 0
        %v1381 = vsel %vm428, %v1324, 0
        %v1384 = vsel %vm428, %v1325, 0
        %v1387 = vsel %vm428, %v1326, 0
        %v1390 = vsel %vm428, %v1327, 0
        %v1393 = vsel %vm428, %v1328, 0
        %v1396 = vsel %vm428, %v1329, 0
        %v1399 = vsel %vm428, %v1330, 0
        %v1402 = vsel %vm428, %v1331, 0
        %v1405 = vsel %vm428, %v1332, 0
        %v1408 = vsel %vm428, %v1333, 0
        %v1411 = vsel %vm428, %v1334, 0
        %v1414 = vsel %vm428, %v1335, 0
        %v1417 = vsel %vm428, %v1352, 0
        %v1420 = vsel %vm428, %v1353, 0
        %v1423 = vsel %vm428, %v1354, 0
        %v1426 = vsel %vm428, %v1355, 0
        %v1429 = vsel %vm428, %v1356, 0
        %v1432 = vsel %vm428, %v1357, 0
        %v1435 = vsel %vm428, %v1358, 0
        %v1438 = vsel %vm428, %v1359, 0
        %v1441 = vsel %vm428, %v1360, 0
        %v1444 = vsel %vm428, %v1361, 0
        %v1447 = vsel %vm428, %v1362, 0
        %v1450 = vsel %vm428, %v1363, 0
        %v1453 = vsel %vm428, %v1364, 0
        %v1456 = vsel %vm428, %v1365, 0
        %v1459 = vsel %vm428, %v1366, 0
        %v1462 = vsel %vm428, %v1367, 0
        %1464 = vmatprep.subr.mxu0 0.0
        %1465 = vmatpush1.msra.mxu0 0.0
        %1466 = vmatprep.subr.mxu0 0.0
        %1467 = vmatpush1.msra.mxu0 0.0
        %1468 = vmatprep.subr.mxu0 0.0
        %1469 = vmatpush1.msra.mxu0 0.0
        %1470 = vmatprep.subr.mxu0 0.0
        %1471 = vmatpush1.msra.mxu0 0.0
        %1472 = vmatprep.subr.mxu0 0.0
        %1473 = vmatpush1.msra.mxu0 0.0
        %1474 = vmatprep.subr.mxu0 0.0
        %1475 = vmatpush1.msra.mxu0 0.0
        %1476 = vmatprep.subr.mxu0 0.0
        %1477 = vmatpush1.msra.mxu0 0.0
        %1478 = vmatprep.subr.mxu0 0.0
        %1479 = vmatpush1.msra.mxu0 0.0
        %1480 = vmatprep.subr.mxu0 0.0
        %1481 = vmatpush1.msra.mxu0 0.0
        %1482 = vmatprep.subr.mxu0 0.0
        %1483 = vmatpush1.msra.mxu0 0.0
        %1484 = vmatprep.subr.mxu0 0.0
        %1485 = vmatpush1.msra.mxu0 0.0
        %1486 = vmatprep.subr.mxu0 0.0
        %1487 = vmatpush1.msra.mxu0 0.0
        %1488 = vmatprep.subr.mxu0 0.0
        %1489 = vmatpush1.msra.mxu0 0.0
        %1490 = vmatprep.subr.mxu0 0.0
        %1491 = vmatpush1.msra.mxu0 0.0
        %1492 = vmatprep.subr.mxu0 %v338
        %1493 = vmatpush1.msra.mxu0 %v336
        %1494 = vmatprep.subr.mxu0 %v332
        %1495 = vmatpush1.msra.mxu0 %v330
        %1496 = vmatprep.subr.mxu0 0.0
        %1497 = vmatpush2.msra.mxu0 0.0
        %1498 = vmatprep.subr.mxu0 0.0
        %1499 = vmatpush2.msra.mxu0 0.0
        %1500 = vmatprep.subr.mxu0 0.0
        %1501 = vmatpush2.msra.mxu0 0.0
        %1502 = vmatprep.subr.mxu0 0.0
        %1503 = vmatpush2.msra.mxu0 0.0
        %1504 = vmatprep.subr.mxu0 0.0
        %1505 = vmatpush2.msra.mxu0 0.0
        %1506 = vmatprep.subr.mxu0 0.0
        %1507 = vmatpush2.msra.mxu0 0.0
        %1508 = vmatprep.subr.mxu0 0.0
        %1509 = vmatpush2.msra.mxu0 0.0
        %1510 = vmatprep.subr.mxu0 0.0
        %1511 = vmatpush2.msra.mxu0 0.0
        %1512 = vmatprep.subr.mxu0 0.0
        %1513 = vmatpush2.msra.mxu0 0.0
        %1514 = vmatprep.subr.mxu0 0.0
        %1515 = vmatpush2.msra.mxu0 0.0
        %1516 = vmatprep.subr.mxu0 0.0
        %1517 = vmatpush2.msra.mxu0 0.0
        %1518 = vmatprep.subr.mxu0 0.0
        %1519 = vmatpush2.msra.mxu0 0.0
        %1520 = vmatprep.subr.mxu0 0.0
        %1521 = vmatpush2.msra.mxu0 0.0
        %1522 = vmatprep.subr.mxu0 0.0
        %1523 = vmatpush2.msra.mxu0 0.0
        %1524 = vmatprep.subr.mxu0 0.0
        %1525 = vmatpush2.msra.mxu0 0.0
        %1526 = vmatprep.subr.mxu0 0.0
        %1527 = vmatpush2.msra.mxu0 0.0
        %1528 = vmatprep.mubr.f32.mxu0 0.0
        %1529 = vmatmul.mubr.f32.gmra.mxu0 %v1369
        %v1530 = vpop.f32.mrf.mxu0
        %v1531 = vadd.f32 0.0, %v1530
        %v1532 = vpop.f32.mrf.mxu0
        %v1533 = vadd.f32 0.0, %v1532
        %1534 = vmatprep.mubr.f32.mxu0 0.0
        %1535 = vmatmul.mubr.f32.gmra.mxu0 %v1372
        %v1536 = vpop.f32.mrf.mxu0
        %v1537 = vadd.f32 0.0, %v1536
        %v1538 = vpop.f32.mrf.mxu0
        %v1539 = vadd.f32 0.0, %v1538
        %1540 = vmatprep.mubr.f32.mxu0 0.0
        %1541 = vmatmul.mubr.f32.gmra.mxu0 %v1375
        %v1542 = vpop.f32.mrf.mxu0
        %v1543 = vadd.f32 0.0, %v1542
        %v1544 = vpop.f32.mrf.mxu0
        %v1545 = vadd.f32 0.0, %v1544
        %1546 = vmatprep.mubr.f32.mxu0 0.0
        %1547 = vmatmul.mubr.f32.gmra.mxu0 %v1378
        %v1548 = vpop.f32.mrf.mxu0
        %v1549 = vadd.f32 0.0, %v1548
        %v1550 = vpop.f32.mrf.mxu0
        %v1551 = vadd.f32 0.0, %v1550
        %1552 = vmatprep.mubr.f32.mxu0 0.0
        %1553 = vmatmul.mubr.f32.gmra.mxu0 %v1381
        %v1554 = vpop.f32.mrf.mxu0
        %v1555 = vadd.f32 0.0, %v1554
        %v1556 = vpop.f32.mrf.mxu0
        %v1557 = vadd.f32 0.0, %v1556
        %1558 = vmatprep.mubr.f32.mxu0 0.0
        %1559 = vmatmul.mubr.f32.gmra.mxu0 %v1384
        %v1560 = vpop.f32.mrf.mxu0
        %v1561 = vadd.f32 0.0, %v1560
        %v1562 = vpop.f32.mrf.mxu0
        %v1563 = vadd.f32 0.0, %v1562
        %1564 = vmatprep.mubr.f32.mxu0 0.0
        %1565 = vmatmul.mubr.f32.gmra.mxu0 %v1387
        %v1566 = vpop.f32.mrf.mxu0
        %v1567 = vadd.f32 0.0, %v1566
        %v1568 = vpop.f32.mrf.mxu0
        %v1569 = vadd.f32 0.0, %v1568
        %1570 = vmatprep.mubr.f32.mxu0 0.0
        %1571 = vmatmul.mubr.f32.gmra.mxu0 %v1390
        %v1572 = vpop.f32.mrf.mxu0
        %v1573 = vadd.f32 0.0, %v1572
        %v1574 = vpop.f32.mrf.mxu0
        %v1575 = vadd.f32 0.0, %v1574
        %1576 = vmatprep.mubr.f32.mxu0 0.0
        %1577 = vmatmul.mubr.f32.gmra.mxu0 %v1393
        %v1578 = vpop.f32.mrf.mxu0
        %v1579 = vadd.f32 0.0, %v1578
        %v1580 = vpop.f32.mrf.mxu0
        %v1581 = vadd.f32 0.0, %v1580
        %1582 = vmatprep.mubr.f32.mxu0 0.0
        %1583 = vmatmul.mubr.f32.gmra.mxu0 %v1396
        %v1584 = vpop.f32.mrf.mxu0
        %v1585 = vadd.f32 0.0, %v1584
        %v1586 = vpop.f32.mrf.mxu0
        %v1587 = vadd.f32 0.0, %v1586
        %1588 = vmatprep.mubr.f32.mxu0 0.0
        %1589 = vmatmul.mubr.f32.gmra.mxu0 %v1399
        %v1590 = vpop.f32.mrf.mxu0
        %v1591 = vadd.f32 0.0, %v1590
        %v1592 = vpop.f32.mrf.mxu0
        %v1593 = vadd.f32 0.0, %v1592
        %1594 = vmatprep.mubr.f32.mxu0 0.0
        %1595 = vmatmul.mubr.f32.gmra.mxu0 %v1402
        %v1596 = vpop.f32.mrf.mxu0
        %v1597 = vadd.f32 0.0, %v1596
        %v1598 = vpop.f32.mrf.mxu0
        %v1599 = vadd.f32 0.0, %v1598
        %1600 = vmatprep.mubr.f32.mxu0 0.0
        %1601 = vmatmul.mubr.f32.gmra.mxu0 %v1405
        %v1602 = vpop.f32.mrf.mxu0
        %v1603 = vadd.f32 0.0, %v1602
        %v1604 = vpop.f32.mrf.mxu0
        %v1605 = vadd.f32 0.0, %v1604
        %1606 = vmatprep.mubr.f32.mxu0 0.0
        %1607 = vmatmul.mubr.f32.gmra.mxu0 %v1408
        %v1608 = vpop.f32.mrf.mxu0
        %v1609 = vadd.f32 0.0, %v1608
        %v1610 = vpop.f32.mrf.mxu0
        %v1611 = vadd.f32 0.0, %v1610
        %1612 = vmatprep.mubr.f32.mxu0 0.0
        %1613 = vmatmul.mubr.f32.gmra.mxu0 %v1411
        %v1614 = vpop.f32.mrf.mxu0
        %v1615 = vadd.f32 0.0, %v1614
        %v1616 = vpop.f32.mrf.mxu0
        %v1617 = vadd.f32 0.0, %v1616
        %1618 = vmatprep.mubr.f32.mxu0 0.0
        %1619 = vmatmul.mubr.f32.gmra.mxu0 %v1414
        %v1620 = vpop.f32.mrf.mxu0
        %v1621 = vadd.f32 0.0, %v1620
        %v1622 = vpop.f32.mrf.mxu0
        %v1623 = vadd.f32 0.0, %v1622
        %1624 = vmatprep.mubr.f32.mxu0 0.0
        %1625 = vmatmul.mubr.f32.gmra.mxu0 %v1417
        %v1626 = vpop.f32.mrf.mxu0
        %v1627 = vadd.f32 0.0, %v1626
        %v1628 = vpop.f32.mrf.mxu0
        %v1629 = vadd.f32 0.0, %v1628
        %1630 = vmatprep.mubr.f32.mxu0 0.0
        %1631 = vmatmul.mubr.f32.gmra.mxu0 %v1420
        %v1632 = vpop.f32.mrf.mxu0
        %v1633 = vadd.f32 0.0, %v1632
        %v1634 = vpop.f32.mrf.mxu0
        %v1635 = vadd.f32 0.0, %v1634
        %1636 = vmatprep.mubr.f32.mxu0 0.0
        %1637 = vmatmul.mubr.f32.gmra.mxu0 %v1423
        %v1638 = vpop.f32.mrf.mxu0
        %v1639 = vadd.f32 0.0, %v1638
        %v1640 = vpop.f32.mrf.mxu0
        %v1641 = vadd.f32 0.0, %v1640
        %1642 = vmatprep.mubr.f32.mxu0 0.0
        %1643 = vmatmul.mubr.f32.gmra.mxu0 %v1426
        %v1644 = vpop.f32.mrf.mxu0
        %v1645 = vadd.f32 0.0, %v1644
        %v1646 = vpop.f32.mrf.mxu0
        %v1647 = vadd.f32 0.0, %v1646
        %1648 = vmatprep.mubr.f32.mxu0 0.0
        %1649 = vmatmul.mubr.f32.gmra.mxu0 %v1429
        %v1650 = vpop.f32.mrf.mxu0
        %v1651 = vadd.f32 0.0, %v1650
        %v1652 = vpop.f32.mrf.mxu0
        %v1653 = vadd.f32 0.0, %v1652
        %1654 = vmatprep.mubr.f32.mxu0 0.0
        %1655 = vmatmul.mubr.f32.gmra.mxu0 %v1432
        %v1656 = vpop.f32.mrf.mxu0
        %v1657 = vadd.f32 0.0, %v1656
        %v1658 = vpop.f32.mrf.mxu0
        %v1659 = vadd.f32 0.0, %v1658
        %1660 = vmatprep.mubr.f32.mxu0 0.0
        %1661 = vmatmul.mubr.f32.gmra.mxu0 %v1435
        %v1662 = vpop.f32.mrf.mxu0
        %v1663 = vadd.f32 0.0, %v1662
        %v1664 = vpop.f32.mrf.mxu0
        %v1665 = vadd.f32 0.0, %v1664
        %1666 = vmatprep.mubr.f32.mxu0 0.0
        %1667 = vmatmul.mubr.f32.gmra.mxu0 %v1438
        %v1668 = vpop.f32.mrf.mxu0
        %v1669 = vadd.f32 0.0, %v1668
        %v1670 = vpop.f32.mrf.mxu0
        %v1671 = vadd.f32 0.0, %v1670
        %1672 = vmatprep.mubr.f32.mxu0 0.0
        %1673 = vmatmul.mubr.f32.gmra.mxu0 %v1441
        %v1674 = vpop.f32.mrf.mxu0
        %v1675 = vadd.f32 0.0, %v1674
        %v1676 = vpop.f32.mrf.mxu0
        %v1677 = vadd.f32 0.0, %v1676
        %1678 = vmatprep.mubr.f32.mxu0 0.0
        %1679 = vmatmul.mubr.f32.gmra.mxu0 %v1444
        %v1680 = vpop.f32.mrf.mxu0
        %v1681 = vadd.f32 0.0, %v1680
        %v1682 = vpop.f32.mrf.mxu0
        %v1683 = vadd.f32 0.0, %v1682
        %1684 = vmatprep.mubr.f32.mxu0 0.0
        %1685 = vmatmul.mubr.f32.gmra.mxu0 %v1447
        %v1686 = vpop.f32.mrf.mxu0
        %v1687 = vadd.f32 0.0, %v1686
        %v1688 = vpop.f32.mrf.mxu0
        %v1689 = vadd.f32 0.0, %v1688
        %1690 = vmatprep.mubr.f32.mxu0 0.0
        %1691 = vmatmul.mubr.f32.gmra.mxu0 %v1450
        %v1692 = vpop.f32.mrf.mxu0
        %v1693 = vadd.f32 0.0, %v1692
        %v1694 = vpop.f32.mrf.mxu0
        %v1695 = vadd.f32 0.0, %v1694
        %1696 = vmatprep.mubr.f32.mxu0 0.0
        %1697 = vmatmul.mubr.f32.gmra.mxu0 %v1453
        %v1698 = vpop.f32.mrf.mxu0
        %v1699 = vadd.f32 0.0, %v1698
        %v1700 = vpop.f32.mrf.mxu0
        %v1701 = vadd.f32 0.0, %v1700
        %1702 = vmatprep.mubr.f32.mxu0 0.0
        %1703 = vmatmul.mubr.f32.gmra.mxu0 %v1456
        %v1704 = vpop.f32.mrf.mxu0
        %v1705 = vadd.f32 0.0, %v1704
        %v1706 = vpop.f32.mrf.mxu0
        %v1707 = vadd.f32 0.0, %v1706
        %1708 = vmatprep.mubr.f32.mxu0 0.0
        %1709 = vmatmul.mubr.f32.gmra.mxu0 %v1459
        %v1710 = vpop.f32.mrf.mxu0
        %v1711 = vadd.f32 0.0, %v1710
        %v1712 = vpop.f32.mrf.mxu0
        %v1713 = vadd.f32 0.0, %v1712
        %1714 = vmatprep.mubr.f32.mxu0 0.0
        %1715 = vmatmul.mubr.f32.gmra.mxu0 %v1462
        %v1716 = vpop.f32.mrf.mxu0
        %v1717 = vadd.f32 0.0, %v1716
        %v1718 = vpop.f32.mrf.mxu0
        %v1719 = vadd.f32 0.0, %v1718
        %1720 = vdwg.mxu0
        %v1721 = vmax.f32 %v1531, %v1533
        %1722 = vmax.xlane.f32.xlu0 %v1721
        %v1723 = vpop.xlane.xlu0 %1722
        %v1724 = vmax.f32 %v1537, %v1539
        %1725 = vmax.xlane.f32.xlu0 %v1724
        %v1726 = vpop.xlane.xlu0 %1725
        %v1727 = vmax.f32 %v1543, %v1545
        %1728 = vmax.xlane.f32.xlu0 %v1727
        %v1729 = vpop.xlane.xlu0 %1728
        %v1730 = vmax.f32 %v1549, %v1551
        %1731 = vmax.xlane.f32.xlu0 %v1730
        %v1732 = vpop.xlane.xlu0 %1731
        %v1733 = vmax.f32 %v1555, %v1557
        %1734 = vmax.xlane.f32.xlu0 %v1733
        %v1735 = vpop.xlane.xlu0 %1734
        %v1736 = vmax.f32 %v1561, %v1563
        %1737 = vmax.xlane.f32.xlu0 %v1736
        %v1738 = vpop.xlane.xlu0 %1737
        %v1739 = vmax.f32 %v1567, %v1569
        %1740 = vmax.xlane.f32.xlu0 %v1739
        %v1741 = vpop.xlane.xlu0 %1740
        %v1742 = vmax.f32 %v1573, %v1575
        %1743 = vmax.xlane.f32.xlu0 %v1742
        %v1744 = vpop.xlane.xlu0 %1743
        %v1745 = vmax.f32 %v1579, %v1581
        %1746 = vmax.xlane.f32.xlu0 %v1745
        %v1747 = vpop.xlane.xlu0 %1746
        %v1748 = vmax.f32 %v1585, %v1587
        %1749 = vmax.xlane.f32.xlu0 %v1748
        %v1750 = vpop.xlane.xlu0 %1749
        %v1751 = vmax.f32 %v1591, %v1593
        %1752 = vmax.xlane.f32.xlu0 %v1751
        %v1753 = vpop.xlane.xlu0 %1752
        %v1754 = vmax.f32 %v1597, %v1599
        %1755 = vmax.xlane.f32.xlu0 %v1754
        %v1756 = vpop.xlane.xlu0 %1755
        %v1757 = vmax.f32 %v1603, %v1605
        %1758 = vmax.xlane.f32.xlu0 %v1757
        %v1759 = vpop.xlane.xlu0 %1758
        %v1760 = vmax.f32 %v1609, %v1611
        %1761 = vmax.xlane.f32.xlu0 %v1760
        %v1762 = vpop.xlane.xlu0 %1761
        %v1763 = vmax.f32 %v1615, %v1617
        %1764 = vmax.xlane.f32.xlu0 %v1763
        %v1765 = vpop.xlane.xlu0 %1764
        %v1766 = vmax.f32 %v1621, %v1623
        %1767 = vmax.xlane.f32.xlu0 %v1766
        %v1768 = vpop.xlane.xlu0 %1767
        %v1769 = vmax.f32 %v1627, %v1629
        %1770 = vmax.xlane.f32.xlu0 %v1769
        %v1771 = vpop.xlane.xlu0 %1770
        %v1772 = vmax.f32 %v1633, %v1635
        %1773 = vmax.xlane.f32.xlu0 %v1772
        %v1774 = vpop.xlane.xlu0 %1773
        %v1775 = vmax.f32 %v1639, %v1641
        %1776 = vmax.xlane.f32.xlu0 %v1775
        %v1777 = vpop.xlane.xlu0 %1776
        %v1778 = vmax.f32 %v1645, %v1647
        %1779 = vmax.xlane.f32.xlu0 %v1778
        %v1780 = vpop.xlane.xlu0 %1779
        %v1781 = vmax.f32 %v1651, %v1653
        %1782 = vmax.xlane.f32.xlu0 %v1781
        %v1783 = vpop.xlane.xlu0 %1782
        %v1784 = vmax.f32 %v1657, %v1659
        %1785 = vmax.xlane.f32.xlu0 %v1784
        %v1786 = vpop.xlane.xlu0 %1785
        %v1787 = vmax.f32 %v1663, %v1665
        %1788 = vmax.xlane.f32.xlu0 %v1787
        %v1789 = vpop.xlane.xlu0 %1788
        %v1790 = vmax.f32 %v1669, %v1671
        %1791 = vmax.xlane.f32.xlu0 %v1790
        %v1792 = vpop.xlane.xlu0 %1791
        %v1793 = vmax.f32 %v1675, %v1677
        %1794 = vmax.xlane.f32.xlu0 %v1793
        %v1795 = vpop.xlane.xlu0 %1794
        %v1796 = vmax.f32 %v1681, %v1683
        %1797 = vmax.xlane.f32.xlu0 %v1796
        %v1798 = vpop.xlane.xlu0 %1797
        %v1799 = vmax.f32 %v1687, %v1689
        %1800 = vmax.xlane.f32.xlu0 %v1799
        %v1801 = vpop.xlane.xlu0 %1800
        %v1802 = vmax.f32 %v1693, %v1695
        %1803 = vmax.xlane.f32.xlu0 %v1802
        %v1804 = vpop.xlane.xlu0 %1803
        %v1805 = vmax.f32 %v1699, %v1701
        %1806 = vmax.xlane.f32.xlu0 %v1805
        %v1807 = vpop.xlane.xlu0 %1806
        %v1808 = vmax.f32 %v1705, %v1707
        %1809 = vmax.xlane.f32.xlu0 %v1808
        %v1810 = vpop.xlane.xlu0 %1809
        %v1811 = vmax.f32 %v1711, %v1713
        %1812 = vmax.xlane.f32.xlu0 %v1811
        %v1813 = vpop.xlane.xlu0 %1812
        %v1814 = vmax.f32 %v1717, %v1719
        %1815 = vmax.xlane.f32.xlu0 %v1814
        %v1816 = vpop.xlane.xlu0 %1815
        %v1817 = vsub.f32 %v1531, %v1723
        %v1818 = vsub.f32 %v1533, %v1723
        %v1819 = vsub.f32 %v1537, %v1726
        %v1820 = vsub.f32 %v1539, %v1726
        %v1821 = vsub.f32 %v1543, %v1729
        %v1822 = vsub.f32 %v1545, %v1729
        %v1823 = vsub.f32 %v1549, %v1732
        %v1824 = vsub.f32 %v1551, %v1732
        %v1825 = vsub.f32 %v1555, %v1735
        %v1826 = vsub.f32 %v1557, %v1735
        %v1827 = vsub.f32 %v1561, %v1738
        %v1828 = vsub.f32 %v1563, %v1738
        %v1829 = vsub.f32 %v1567, %v1741
        %v1830 = vsub.f32 %v1569, %v1741
        %v1831 = vsub.f32 %v1573, %v1744
        %v1832 = vsub.f32 %v1575, %v1744
        %v1833 = vsub.f32 %v1579, %v1747
        %v1834 = vsub.f32 %v1581, %v1747
        %v1835 = vsub.f32 %v1585, %v1750
        %v1836 = vsub.f32 %v1587, %v1750
        %v1837 = vsub.f32 %v1591, %v1753
        %v1838 = vsub.f32 %v1593, %v1753
        %v1839 = vsub.f32 %v1597, %v1756
        %v1840 = vsub.f32 %v1599, %v1756
        %v1841 = vsub.f32 %v1603, %v1759
        %v1842 = vsub.f32 %v1605, %v1759
        %v1843 = vsub.f32 %v1609, %v1762
        %v1844 = vsub.f32 %v1611, %v1762
        %v1845 = vsub.f32 %v1615, %v1765
        %v1846 = vsub.f32 %v1617, %v1765
        %v1847 = vsub.f32 %v1621, %v1768
        %v1848 = vsub.f32 %v1623, %v1768
        %v1849 = vsub.f32 %v1627, %v1771
        %v1850 = vsub.f32 %v1629, %v1771
        %v1851 = vsub.f32 %v1633, %v1774
        %v1852 = vsub.f32 %v1635, %v1774
        %v1853 = vsub.f32 %v1639, %v1777
        %v1854 = vsub.f32 %v1641, %v1777
        %v1855 = vsub.f32 %v1645, %v1780
        %v1856 = vsub.f32 %v1647, %v1780
        %v1857 = vsub.f32 %v1651, %v1783
        %v1858 = vsub.f32 %v1653, %v1783
        %v1859 = vsub.f32 %v1657, %v1786
        %v1860 = vsub.f32 %v1659, %v1786
        %v1861 = vsub.f32 %v1663, %v1789
        %v1862 = vsub.f32 %v1665, %v1789
        %v1863 = vsub.f32 %v1669, %v1792
        %v1864 = vsub.f32 %v1671, %v1792
        %v1865 = vsub.f32 %v1675, %v1795
        %v1866 = vsub.f32 %v1677, %v1795
        %v1867 = vsub.f32 %v1681, %v1798
        %v1868 = vsub.f32 %v1683, %v1798
        %v1869 = vsub.f32 %v1687, %v1801
        %v1870 = vsub.f32 %v1689, %v1801
        %v1871 = vsub.f32 %v1693, %v1804
        %v1872 = vsub.f32 %v1695, %v1804
        %v1873 = vsub.f32 %v1699, %v1807
        %v1874 = vsub.f32 %v1701, %v1807
        %v1875 = vsub.f32 %v1705, %v1810
        %v1876 = vsub.f32 %v1707, %v1810
        %v1877 = vsub.f32 %v1711, %v1813
        %v1878 = vsub.f32 %v1713, %v1813
        %v1879 = vsub.f32 %v1717, %v1816
        %v1880 = vsub.f32 %v1719, %v1816
        %v1881 = vmul.f32 %v1817, 1.442695
        %v1882 = vpow.pop %v1881
        %v1883 = vmul.f32 %v1818, 1.442695
        %v1884 = vpow.pop %v1883
        %v1885 = vmul.f32 %v1819, 1.442695
        %v1886 = vpow.pop %v1885
        %v1887 = vmul.f32 %v1820, 1.442695
        %v1888 = vpow.pop %v1887
        %v1889 = vmul.f32 %v1821, 1.442695
        %v1890 = vpow.pop %v1889
        %v1891 = vmul.f32 %v1822, 1.442695
        %v1892 = vpow.pop %v1891
        %v1893 = vmul.f32 %v1823, 1.442695
        %v1894 = vpow.pop %v1893
        %v1895 = vmul.f32 %v1824, 1.442695
        %v1896 = vpow.pop %v1895
        %v1897 = vmul.f32 %v1825, 1.442695
        %v1898 = vpow.pop %v1897
        %v1899 = vmul.f32 %v1826, 1.442695
        %v1900 = vpow.pop %v1899
        %v1901 = vmul.f32 %v1827, 1.442695
        %v1902 = vpow.pop %v1901
        %v1903 = vmul.f32 %v1828, 1.442695
        %v1904 = vpow.pop %v1903
        %v1905 = vmul.f32 %v1829, 1.442695
        %v1906 = vpow.pop %v1905
        %v1907 = vmul.f32 %v1830, 1.442695
        %v1908 = vpow.pop %v1907
        %v1909 = vmul.f32 %v1831, 1.442695
        %v1910 = vpow.pop %v1909
        %v1911 = vmul.f32 %v1832, 1.442695
        %v1912 = vpow.pop %v1911
        %v1913 = vmul.f32 %v1833, 1.442695
        %v1914 = vpow.pop %v1913
        %v1915 = vmul.f32 %v1834, 1.442695
        %v1916 = vpow.pop %v1915
        %v1917 = vmul.f32 %v1835, 1.442695
        %v1918 = vpow.pop %v1917
        %v1919 = vmul.f32 %v1836, 1.442695
        %v1920 = vpow.pop %v1919
        %v1921 = vmul.f32 %v1837, 1.442695
        %v1922 = vpow.pop %v1921
        %v1923 = vmul.f32 %v1838, 1.442695
        %v1924 = vpow.pop %v1923
        %v1925 = vmul.f32 %v1839, 1.442695
        %v1926 = vpow.pop %v1925
        %v1927 = vmul.f32 %v1840, 1.442695
        %v1928 = vpow.pop %v1927
        %v1929 = vmul.f32 %v1841, 1.442695
        %v1930 = vpow.pop %v1929
        %v1931 = vmul.f32 %v1842, 1.442695
        %v1932 = vpow.pop %v1931
        %v1933 = vmul.f32 %v1843, 1.442695
        %v1934 = vpow.pop %v1933
        %v1935 = vmul.f32 %v1844, 1.442695
        %v1936 = vpow.pop %v1935
        %v1937 = vmul.f32 %v1845, 1.442695
        %v1938 = vpow.pop %v1937
        %v1939 = vmul.f32 %v1846, 1.442695
        %v1940 = vpow.pop %v1939
        %v1941 = vmul.f32 %v1847, 1.442695
        %v1942 = vpow.pop %v1941
        %v1943 = vmul.f32 %v1848, 1.442695
        %v1944 = vpow.pop %v1943
        %v1945 = vmul.f32 %v1849, 1.442695
        %v1946 = vpow.pop %v1945
        %v1947 = vmul.f32 %v1850, 1.442695
        %v1948 = vpow.pop %v1947
        %v1949 = vmul.f32 %v1851, 1.442695
        %v1950 = vpow.pop %v1949
        %v1951 = vmul.f32 %v1852, 1.442695
        %v1952 = vpow.pop %v1951
        %v1953 = vmul.f32 %v1853, 1.442695
        %v1954 = vpow.pop %v1953
        %v1955 = vmul.f32 %v1854, 1.442695
        %v1956 = vpow.pop %v1955
        %v1957 = vmul.f32 %v1855, 1.442695
        %v1958 = vpow.pop %v1957
        %v1959 = vmul.f32 %v1856, 1.442695
        %v1960 = vpow.pop %v1959
        %v1961 = vmul.f32 %v1857, 1.442695
        %v1962 = vpow.pop %v1961
        %v1963 = vmul.f32 %v1858, 1.442695
        %v1964 = vpow.pop %v1963
        %v1965 = vmul.f32 %v1859, 1.442695
        %v1966 = vpow.pop %v1965
        %v1967 = vmul.f32 %v1860, 1.442695
        %v1968 = vpow.pop %v1967
        %v1969 = vmul.f32 %v1861, 1.442695
        %v1970 = vpow.pop %v1969
        %v1971 = vmul.f32 %v1862, 1.442695
        %v1972 = vpow.pop %v1971
        %v1973 = vmul.f32 %v1863, 1.442695
        %v1974 = vpow.pop %v1973
        %v1975 = vmul.f32 %v1864, 1.442695
        %v1976 = vpow.pop %v1975
        %v1977 = vmul.f32 %v1865, 1.442695
        %v1978 = vpow.pop %v1977
        %v1979 = vmul.f32 %v1866, 1.442695
        %v1980 = vpow.pop %v1979
        %v1981 = vmul.f32 %v1867, 1.442695
        %v1982 = vpow.pop %v1981
        %v1983 = vmul.f32 %v1868, 1.442695
        %v1984 = vpow.pop %v1983
        %v1985 = vmul.f32 %v1869, 1.442695
        %v1986 = vpow.pop %v1985
        %v1987 = vmul.f32 %v1870, 1.442695
        %v1988 = vpow.pop %v1987
        %v1989 = vmul.f32 %v1871, 1.442695
        %v1990 = vpow.pop %v1989
        %v1991 = vmul.f32 %v1872, 1.442695
        %v1992 = vpow.pop %v1991
        %v1993 = vmul.f32 %v1873, 1.442695
        %v1994 = vpow.pop %v1993
        %v1995 = vmul.f32 %v1874, 1.442695
        %v1996 = vpow.pop %v1995
        %v1997 = vmul.f32 %v1875, 1.442695
        %v1998 = vpow.pop %v1997
        %v1999 = vmul.f32 %v1876, 1.442695
        %v2000 = vpow.pop %v1999
        %v2001 = vmul.f32 %v1877, 1.442695
        %v2002 = vpow.pop %v2001
        %v2003 = vmul.f32 %v1878, 1.442695
        %v2004 = vpow.pop %v2003
        %v2005 = vmul.f32 %v1879, 1.442695
        %v2006 = vpow.pop %v2005
        %v2007 = vmul.f32 %v1880, 1.442695
        %v2008 = vpow.pop %v2007
        %2009 = vmatprep.subr.mxu0 %v1944
        %2010 = vmatpush1.xpose.msra.mxu0 %v1942
        %2011 = vmatprep.subr.mxu0 %v1940
        %2012 = vmatpush1.xpose.msra.mxu0 %v1938
        %2013 = vmatprep.subr.mxu0 %v1936
        %2014 = vmatpush1.xpose.msra.mxu0 %v1934
        %2015 = vmatprep.subr.mxu0 %v1932
        %2016 = vmatpush1.xpose.msra.mxu0 %v1930
        %2017 = vmatprep.subr.mxu0 %v1928
        %2018 = vmatpush1.xpose.msra.mxu0 %v1926
        %2019 = vmatprep.subr.mxu0 %v1924
        %2020 = vmatpush1.xpose.msra.mxu0 %v1922
        %2021 = vmatprep.subr.mxu0 %v1920
        %2022 = vmatpush1.xpose.msra.mxu0 %v1918
        %2023 = vmatprep.subr.mxu0 %v1916
        %2024 = vmatpush1.xpose.msra.mxu0 %v1914
        %2025 = vmatprep.subr.mxu0 %v1912
        %2026 = vmatpush1.xpose.msra.mxu0 %v1910
        %2027 = vmatprep.subr.mxu0 %v1908
        %2028 = vmatpush1.xpose.msra.mxu0 %v1906
        %2029 = vmatprep.subr.mxu0 %v1904
        %2030 = vmatpush1.xpose.msra.mxu0 %v1902
        %2031 = vmatprep.subr.mxu0 %v1900
        %2032 = vmatpush1.xpose.msra.mxu0 %v1898
        %2033 = vmatprep.subr.mxu0 %v1896
        %2034 = vmatpush1.xpose.msra.mxu0 %v1894
        %2035 = vmatprep.subr.mxu0 %v1892
        %2036 = vmatpush1.xpose.msra.mxu0 %v1890
        %2037 = vmatprep.subr.mxu0 %v1888
        %2038 = vmatpush1.xpose.msra.mxu0 %v1886
        %2039 = vmatprep.subr.mxu0 %v1884
        %2040 = vmatpush1.xpose.msra.mxu0 %v1882
        %2041 = vmatprep.subr.mxu0 %v2008
        %2042 = vmatpush2.xpose.msra.mxu0 %v2006
        %2043 = vmatprep.subr.mxu0 %v2004
        %2044 = vmatpush2.xpose.msra.mxu0 %v2002
        %2045 = vmatprep.subr.mxu0 %v2000
        %2046 = vmatpush2.xpose.msra.mxu0 %v1998
        %2047 = vmatprep.subr.mxu0 %v1996
        %2048 = vmatpush2.xpose.msra.mxu0 %v1994
        %2049 = vmatprep.subr.mxu0 %v1992
        %2050 = vmatpush2.xpose.msra.mxu0 %v1990
        %2051 = vmatprep.subr.mxu0 %v1988
        %2052 = vmatpush2.xpose.msra.mxu0 %v1986
        %2053 = vmatprep.subr.mxu0 %v1984
        %2054 = vmatpush2.xpose.msra.mxu0 %v1982
        %2055 = vmatprep.subr.mxu0 %v1980
        %2056 = vmatpush2.xpose.msra.mxu0 %v1978
        %2057 = vmatprep.subr.mxu0 %v1976
        %2058 = vmatpush2.xpose.msra.mxu0 %v1974
        %2059 = vmatprep.subr.mxu0 %v1972
        %2060 = vmatpush2.xpose.msra.mxu0 %v1970
        %2061 = vmatprep.subr.mxu0 %v1968
        %2062 = vmatpush2.xpose.msra.mxu0 %v1966
        %2063 = vmatprep.subr.mxu0 %v1964
        %2064 = vmatpush2.xpose.msra.mxu0 %v1962
        %2065 = vmatprep.subr.mxu0 %v1960
        %2066 = vmatpush2.xpose.msra.mxu0 %v1958
        %2067 = vmatprep.subr.mxu0 %v1956
        %2068 = vmatpush2.xpose.msra.mxu0 %v1954
        %2069 = vmatprep.subr.mxu0 %v1952
        %2070 = vmatpush2.xpose.msra.mxu0 %v1950
        %2071 = vmatprep.subr.mxu0 %v1948
        %2072 = vmatpush2.xpose.msra.mxu0 %v1946
        %2073 = vmatprep.mubr.f32.mxu0 1.0
        %2074 = vmatmul.mubr.f32.gmra.mxu0 1.0
        %v2075 = vpop.f32.mrf.mxu0
        %v2076 = vadd.f32 0.0, %v2075
        %v2077 = vpop.f32.mrf.mxu0
        %v2078 = vadd.f32 0.0, %v2077
        %2079 = vdwg.mxu0
        %2080 = vrot.lane.b32.xlu0 %v182, 112
        %v2081 = vpop.permute.xlu0 %2080
        %v2082 = vsel %vm428, %v2081, 0
        %2084 = vmatprep.subr.mxu0 0.0
        %2085 = vmatpush1.msra.mxu0 0.0
        %2086 = vmatprep.subr.mxu0 0.0
        %2087 = vmatpush1.msra.mxu0 0.0
        %2088 = vmatprep.subr.mxu0 0.0
        %2089 = vmatpush1.msra.mxu0 0.0
        %2090 = vmatprep.subr.mxu0 0.0
        %2091 = vmatpush1.msra.mxu0 0.0
        %2092 = vmatprep.subr.mxu0 0.0
        %2093 = vmatpush1.msra.mxu0 0.0
        %2094 = vmatprep.subr.mxu0 0.0
        %2095 = vmatpush1.msra.mxu0 0.0
        %2096 = vmatprep.subr.mxu0 0.0
        %2097 = vmatpush1.msra.mxu0 0.0
        %2098 = vmatprep.subr.mxu0 0.0
        %2099 = vmatpush1.msra.mxu0 0.0
        %2100 = vmatprep.subr.mxu0 0.0
        %2101 = vmatpush1.msra.mxu0 0.0
        %2102 = vmatprep.subr.mxu0 0.0
        %2103 = vmatpush1.msra.mxu0 0.0
        %2104 = vmatprep.subr.mxu0 0.0
        %2105 = vmatpush1.msra.mxu0 0.0
        %2106 = vmatprep.subr.mxu0 0.0
        %2107 = vmatpush1.msra.mxu0 0.0
        %2108 = vmatprep.subr.mxu0 0.0
        %2109 = vmatpush1.msra.mxu0 0.0
        %2110 = vmatprep.subr.mxu0 0.0
        %2111 = vmatpush1.msra.mxu0 0.0
        %2112 = vmatprep.subr.mxu0 %v362
        %2113 = vmatpush1.msra.mxu0 %v360
        %2114 = vmatprep.subr.mxu0 %v356
        %2115 = vmatpush1.msra.mxu0 %v354
        %2116 = vmatprep.subr.mxu0 0.0
        %2117 = vmatpush2.msra.mxu0 0.0
        %2118 = vmatprep.subr.mxu0 0.0
        %2119 = vmatpush2.msra.mxu0 0.0
        %2120 = vmatprep.subr.mxu0 0.0
        %2121 = vmatpush2.msra.mxu0 0.0
        %2122 = vmatprep.subr.mxu0 0.0
        %2123 = vmatpush2.msra.mxu0 0.0
        %2124 = vmatprep.subr.mxu0 0.0
        %2125 = vmatpush2.msra.mxu0 0.0
        %2126 = vmatprep.subr.mxu0 0.0
        %2127 = vmatpush2.msra.mxu0 0.0
        %2128 = vmatprep.subr.mxu0 0.0
        %2129 = vmatpush2.msra.mxu0 0.0
        %2130 = vmatprep.subr.mxu0 0.0
        %2131 = vmatpush2.msra.mxu0 0.0
        %2132 = vmatprep.subr.mxu0 0.0
        %2133 = vmatpush2.msra.mxu0 0.0
        %2134 = vmatprep.subr.mxu0 0.0
        %2135 = vmatpush2.msra.mxu0 0.0
        %2136 = vmatprep.subr.mxu0 0.0
        %2137 = vmatpush2.msra.mxu0 0.0
        %2138 = vmatprep.subr.mxu0 0.0
        %2139 = vmatpush2.msra.mxu0 0.0
        %2140 = vmatprep.subr.mxu0 0.0
        %2141 = vmatpush2.msra.mxu0 0.0
        %2142 = vmatprep.subr.mxu0 0.0
        %2143 = vmatpush2.msra.mxu0 0.0
        %2144 = vmatprep.subr.mxu0 0.0
        %2145 = vmatpush2.msra.mxu0 0.0
        %2146 = vmatprep.subr.mxu0 0.0
        %2147 = vmatpush2.msra.mxu0 0.0
        %2148 = vmatprep.mubr.f32.mxu0 0.0
        %2149 = vmatmul.mubr.f32.gmra.mxu0 %v2082
        %v2150 = vpop.f32.mrf.mxu0
        %v2151 = vadd.f32 0.0, %v2150
        %v2152 = vpop.f32.mrf.mxu0
        %v2153 = vadd.f32 0.0, %v2152
        %2154 = vdwg.mxu0
        %v2155 = vpack.c.bf16 %v2151, %v2151
        %v2156 = vpack.c.bf16 %v2153, %v2153
        %v2157 = vpack.c.bf16 %v1886, %v1882
        %v2158 = vpack.c.bf16 %v1888, %v1884
        %v2159 = vpack.c.bf16 %v1894, %v1890
        %v2160 = vpack.c.bf16 %v1896, %v1892
        %v2161 = vpack.c.bf16 %v1902, %v1898
        %v2162 = vpack.c.bf16 %v1904, %v1900
        %v2163 = vpack.c.bf16 %v1910, %v1906
        %v2164 = vpack.c.bf16 %v1912, %v1908
        %v2165 = vpack.c.bf16 %v1918, %v1914
        %v2166 = vpack.c.bf16 %v1920, %v1916
        %v2167 = vpack.c.bf16 %v1926, %v1922
        %v2168 = vpack.c.bf16 %v1928, %v1924
        %v2169 = vpack.c.bf16 %v1934, %v1930
        %v2170 = vpack.c.bf16 %v1936, %v1932
        %v2171 = vpack.c.bf16 %v1942, %v1938
        %v2172 = vpack.c.bf16 %v1944, %v1940
        %v2173 = vpack.c.bf16 %v1950, %v1946
        %v2174 = vpack.c.bf16 %v1952, %v1948
        %v2175 = vpack.c.bf16 %v1958, %v1954
        %v2176 = vpack.c.bf16 %v1960, %v1956
        %v2177 = vpack.c.bf16 %v1966, %v1962
        %v2178 = vpack.c.bf16 %v1968, %v1964
        %v2179 = vpack.c.bf16 %v1974, %v1970
        %v2180 = vpack.c.bf16 %v1976, %v1972
        %v2181 = vpack.c.bf16 %v1982, %v1978
        %v2182 = vpack.c.bf16 %v1984, %v1980
        %v2183 = vpack.c.bf16 %v1990, %v1986
        %v2184 = vpack.c.bf16 %v1992, %v1988
        %v2185 = vpack.c.bf16 %v1998, %v1994
        %v2186 = vpack.c.bf16 %v2000, %v1996
        %v2187 = vpack.c.bf16 %v2006, %v2002
        %v2188 = vpack.c.bf16 %v2008, %v2004
        %2189 = vmatprep.subr.bf16.mxu0 %v2172
        %2190 = vmatpush1.bf16.xpose.msra.mxu0 %v2171
        %2191 = vmatprep.subr.bf16.mxu0 %v2170
        %2192 = vmatpush1.bf16.xpose.msra.mxu0 %v2169
        %2193 = vmatprep.subr.bf16.mxu0 %v2168
        %2194 = vmatpush1.bf16.xpose.msra.mxu0 %v2167
        %2195 = vmatprep.subr.bf16.mxu0 %v2166
        %2196 = vmatpush1.bf16.xpose.msra.mxu0 %v2165
        %2197 = vmatprep.subr.bf16.mxu0 %v2164
        %2198 = vmatpush1.bf16.xpose.msra.mxu0 %v2163
        %2199 = vmatprep.subr.bf16.mxu0 %v2162
        %2200 = vmatpush1.bf16.xpose.msra.mxu0 %v2161
        %2201 = vmatprep.subr.bf16.mxu0 %v2160
        %2202 = vmatpush1.bf16.xpose.msra.mxu0 %v2159
        %2203 = vmatprep.subr.bf16.mxu0 %v2158
        %2204 = vmatpush1.bf16.xpose.msra.mxu0 %v2157
        %2205 = vmatprep.subr.bf16.mxu0 %v2188
        %2206 = vmatpush2.bf16.xpose.msra.mxu0 %v2187
        %2207 = vmatprep.subr.bf16.mxu0 %v2186
        %2208 = vmatpush2.bf16.xpose.msra.mxu0 %v2185
        %2209 = vmatprep.subr.bf16.mxu0 %v2184
        %2210 = vmatpush2.bf16.xpose.msra.mxu0 %v2183
        %2211 = vmatprep.subr.bf16.mxu0 %v2182
        %2212 = vmatpush2.bf16.xpose.msra.mxu0 %v2181
        %2213 = vmatprep.subr.bf16.mxu0 %v2180
        %2214 = vmatpush2.bf16.xpose.msra.mxu0 %v2179
        %2215 = vmatprep.subr.bf16.mxu0 %v2178
        %2216 = vmatpush2.bf16.xpose.msra.mxu0 %v2177
        %2217 = vmatprep.subr.bf16.mxu0 %v2176
        %2218 = vmatpush2.bf16.xpose.msra.mxu0 %v2175
        %2219 = vmatprep.subr.bf16.mxu0 %v2174
        %2220 = vmatpush2.bf16.xpose.msra.mxu0 %v2173
        %2221 = vmatprep.mubr.bf16.mxu0 %v2156
        %2222 = vmatmul.mubr.bf16.gmra.mxu0 %v2155
        %v2223 = vpop.f32.mrf.mxu0
        %v2224 = vadd.f32 0.0, %v2223
        %v2225 = vpop.f32.mrf.mxu0
        %v2226 = vadd.f32 0.0, %v2225
        %v2227 = vpop.f32.mrf.mxu0
        %v2228 = vpop.f32.mrf.mxu0
        %2229 = vdwg.mxu0
        %v2230 = vrcp.pop %v2076
        %v2231 = vrcp.pop %v2078
        %v2232 = vlaneseq
        %v2233 = vshrl.u32 %v2232, 7
        %v2234 = vsub.s32 0, %v2233
        %v2235 = vrot.slane %v2230, %v2234
        %v2236 = vlaneseq
        %v2237 = vshrl.u32 %v2236, 7
        %v2238 = vsub.s32 0, %v2237
        %v2239 = vrot.slane %v2231, %v2238
        %v2240 = vmul.f32 %v2224, %v2235
        %v2241 = vmul.f32 %v2226, %v2239
        %v2242 = vadd.f32 %v1302, %v2240
        %v2243 = vadd.f32 %v1303, %v2241
        %v2246 = vcombine.low %v2242, %v2243
        %2248 = vst [vmem:[%s163] sm:$0xff] %v2246
        %s2249 = sand.u32 %s93, 1
        %s2250 = scalar_lea.sflag [#allocation3], %s2249
        %s2251 = sand.u32 %s93, 1
        %s2252 = smul.addr %s2251, 8
        %s2253 = scalar_lea.vmem [#allocation2], %s2252
        // Predicated region
        $region33: #{tpu_custom_call.1} parent=31 // pred_check
          %p2254 = pneg %p103
        $region34: #{tpu_custom_call.1} parent=31 // pred_check_branch
          %2256 = sbr.rel (%p2254) target = $region36
        $region35: #{tpu_custom_call.1} parent=31 // pred_region
          %s2258 = ssub.s32 128, 128
          %2259 = vsyncadd %s2250, %s2258
          %s2260 = smul.addr %s17, 2
          %s2261 = smul.addr %s2260, 64
          %s2262 = scalar_lea.hbm %s3, %s2261
          %s2264 = sshll.u32 %s2253, 4
          %s2265 = int_to_ptr.vmem [resolvable:$true] %s2264
          %2267 = dma.vmem_to_hbm [thread:$0]  %s2265, 128, %s2262, %s2250
        $region36: #{tpu_custom_call.1} parent=31 // pred_fallthru
          _
      $region32: #{tpu_custom_call.1} parent=5 // pred_fallthru
        _
      %p2268 = scmp.le.s32.totalorder 2, %s12
      // Predicated region
      $region37: #{tpu_custom_call.1} parent=5 // pred_check
        %p2269 = pneg %p2268
      $region38: #{tpu_custom_call.1} parent=5 // pred_check_branch
        %2271 = sbr.rel (%p2269) target = $region40
      $region39: #{tpu_custom_call.1} parent=5 // pred_region
        %s2272 = ssub.s32 %s12, 2
        // Predicated region
        $region41: #{tpu_custom_call.1} parent=39 // pred_check
          %p2273 = pneg %p109
        $region42: #{tpu_custom_call.1} parent=39 // pred_check_branch
          %2275 = sbr.rel (%p2273) target = $region44
        $region43: #{tpu_custom_call.1} parent=39 // pred_region
          %s2276 = sand.u32 %s94, 1
          %s2277 = scalar_lea.sflag [#allocation3], %s2276
          %s2278 = sand.u32 %s94, 1
          %s2279 = smul.addr %s2278, 8
          %s2280 = scalar_lea.vmem [#allocation2], %s2279
          %2281 = dma.done %s2277, 128
        $region44: #{tpu_custom_call.1} parent=39 // pred_fallthru
          _
      $region40: #{tpu_custom_call.1} parent=5 // pred_fallthru
        _
    $region6: #{tpu_custom_call.1} parent=1 // loop_footer
      %s16 = sadd.s32 1, %s12
    $region7: #{tpu_custom_call.1} parent=1 // loop_footer_branch
      %11 = sbr.rel target = $region3
    $region8: #{tpu_custom_call.1} parent=1 // loop_exit
      _
    %2282 = vsyncpa [#allocation3], 1
    %s2283 = scalar_lea.sflag [#allocation3], 1
    %2284 = vsyncpa %s2283, 1

</llo_original>
